<compile_context>
chip_gen: v5e
topology: v5e:2x2
jax: 0.10.0
libtpu: 0.0.40
codegen_flags: <defaults>
</compile_context>

<pallas_src>
import functools
import math

import jax
import jax.numpy as jnp
import numpy as np
from jax.experimental import pallas as pl
from jax.experimental.pallas import tpu as pltpu


def _round_up(x, m):
    return ((x + m - 1) // m) * m


def _lem_kernel(pre_ref, w_rec_ref, y0_ref, z0_ref,
                y_out_ref, z_out_ref,
                y_st, z_st, *, dt, tt):
    """One grid step = `tt` consecutive LEM time steps for one batch tile.

    pre_ref   : (tt, 4, TB, nhid) f32  hoisted x-projections (+ biases);
                gate 0/1/2 = ms1/ms2/ms3 x-parts, gate 3 = lin_z x-part.
    w_rec_ref : (4, nhid, nhid)        recurrent weights (Wy1, Wy2, Wy3, Wzz).
    y0/z0     : (TB, nhid) f32         initial states (read only at time chunk 0).
    y_out/z_out: (tt, TB, nhid) f32    state trajectories for this chunk.
    y_st/z_st : (TB, nhid) f32 VMEM    state carry across time chunks.
    """
    t = pl.program_id(1)   # time-chunk index (innermost, "arbitrary")

    @pl.when(t == 0)
    def _():
        y_st[...] = y0_ref[...]
        z_st[...] = z0_ref[...]

    wdt = w_rec_ref.dtype
    wy1 = w_rec_ref[0]
    wy2 = w_rec_ref[1]
    wy3 = w_rec_ref[2]
    wzz = w_rec_ref[3]

    def step(i, carry):
        y, z = carry
        yc = y.astype(wdt)
        # Gate pre-activations: hoisted x-part + recurrent y-part (gate-aligned,
        # no lane-crossing slices).
        ms1 = pre_ref[i, 0] + jnp.dot(yc, wy1, preferred_element_type=jnp.float32)
        ms2 = pre_ref[i, 1] + jnp.dot(yc, wy2, preferred_element_type=jnp.float32)
        ms3 = pre_ref[i, 2] + jnp.dot(yc, wy3, preferred_element_type=jnp.float32)

        dt_bar = dt * jax.nn.sigmoid(ms1)
        dt_z = dt * jax.nn.sigmoid(ms2)

        # (1-a)*s + a*t  ==  s + a*(t - s)   (saves a VPU mul per gate)
        new_z = z + dt_z * (jnp.tanh(ms3) - z)

        lin = pre_ref[i, 3] + jnp.dot(new_z.astype(wdt), wzz,
                                      preferred_element_type=jnp.float32)
        new_y = y + dt_bar * (jnp.tanh(lin) - y)

        y_out_ref[i] = new_y
        z_out_ref[i] = new_z
        return new_y, new_z

    y_fin, z_fin = jax.lax.fori_loop(0, tt, step, (y_st[...], z_st[...]),
                                     unroll=True)
    y_st[...] = y_fin
    z_st[...] = z_fin


def lem_forward(inputs, weights, weights_lin_z, bias, bias_lin_z,
                y0, z0, dt, *, time_chunk=8, batch_tile=8,
                weight_dtype=jnp.float32):
    """Pallas LEM forward. inputs: (T, B, ninp) f32. Returns (ys, zs), each (T, B, nhid)."""
    T, B, ninp = inputs.shape
    nhid = y0.shape[-1]
    inputs = inputs.astype(jnp.float32)

    # ---- 1) Hoist the x-projections out of the serial recurrence (plain XLA,
    #         time-parallel, MXU-efficient: one (T*B, ninp) @ (ninp, 4*nhid)).
    w_in = jnp.concatenate([weights[:, :ninp].T,          # (ninp, 3*nhid)
                            weights_lin_z[:, :ninp].T],   # (ninp, nhid)
                           axis=1).astype(jnp.float32)    # (ninp, 4*nhid)
    b_in = jnp.concatenate([bias, bias_lin_z]).astype(jnp.float32)  # (4*nhid,)
    pre = inputs.reshape(T * B, ninp) @ w_in + b_in                 # (T*B, 4*nhid)
    pre = jnp.transpose(pre.reshape(T, B, 4, nhid), (0, 2, 1, 3))   # (T, 4, B, nhid)

    # ---- 2) Gate-major stacked recurrent weights (each gate its own tile).
    wy = weights[:, ninp:].T                                        # (nhid, 3*nhid)
    w_rec = jnp.stack([wy[:, :nhid], wy[:, nhid:2 * nhid], wy[:, 2 * nhid:],
                       weights_lin_z[:, ninp:].T],
                      axis=0).astype(weight_dtype)                  # (4, nhid, nhid)

    # ---- 3) Pad batch to the f32 sublane tile (8) and time to a chunk multiple.
    TT = max(1, min(int(time_chunk), T))
    TB = int(batch_tile)
    B_pad = _round_up(max(B, TB), TB)
    T_pad = _round_up(T, TT)

    pre_p = jnp.pad(pre, ((0, T_pad - T), (0, 0), (0, B_pad - B), (0, 0)))
    y0_p = jnp.pad(y0.astype(jnp.float32), ((0, B_pad - B), (0, 0)))
    z0_p = jnp.pad(z0.astype(jnp.float32), ((0, B_pad - B), (0, 0)))

    n_b = B_pad // TB
    n_t = T_pad // TT

    kernel = functools.partial(_lem_kernel, dt=float(dt), tt=TT)

    grid_spec = pltpu.PrefetchScalarGridSpec(
        num_scalar_prefetch=0,
        grid=(n_b, n_t),                      # batch tiles (parallel) x time chunks (serial)
        in_specs=[
            pl.BlockSpec((TT, 4, TB, nhid), lambda b, t: (t, 0, b, 0)),  # pre
            pl.BlockSpec((4, nhid, nhid), lambda b, t: (0, 0, 0)),       # w_rec (resident)
            pl.BlockSpec((TB, nhid), lambda b, t: (b, 0)),               # y0
            pl.BlockSpec((TB, nhid), lambda b, t: (b, 0)),               # z0
        ],
        out_specs=[
            pl.BlockSpec((TT, TB, nhid), lambda b, t: (t, b, 0)),        # all_y_states
            pl.BlockSpec((TT, TB, nhid), lambda b, t: (t, b, 0)),        # all_z_states
        ],
        scratch_shapes=[
            pltpu.VMEM((TB, nhid), jnp.float32),   # y state carry
            pltpu.VMEM((TB, nhid), jnp.float32),   # z state carry
        ],
    )

    # Explicit VMEM budget (double-buffered pipelined blocks + weights + scratch),
    # generous headroom, clamped so it is valid on v7x's 64 MiB VMEM as well.
    # NOTE: for large nhid on v7x, additionally keep the constant-index weight
    # BlockSpec single-buffered and use weight_dtype=jnp.bfloat16.
    w_itemsize = jnp.dtype(weight_dtype).itemsize
    block_bytes = (
        2 * (TT * 4 * TB * nhid * 4)            # pre (double-buffered)
        + 2 * (4 * nhid * nhid * w_itemsize)    # w_rec
        + 2 * 2 * (TB * nhid * 4)               # y0, z0
        + 2 * 2 * (TT * TB * nhid * 4)          # y_out, z_out
        + 2 * (TB * nhid * 4)                   # scratch
    )
    vmem_limit = int(min(max(4 * block_bytes, 16 * 1024 * 1024), 64 * 1024 * 1024))

    ys, zs = pl.pallas_call(
        kernel,
        grid_spec=grid_spec,
        out_shape=(
            jax.ShapeDtypeStruct((T_pad, B_pad, nhid), jnp.float32),
            jax.ShapeDtypeStruct((T_pad, B_pad, nhid), jnp.float32),
        ),
        compiler_params=pltpu.CompilerParams(
            dimension_semantics=("parallel", "arbitrary"),
            vmem_limit_bytes=vmem_limit,
        ),
    )(pre_p, w_rec, y0_p, z0_p)

    return ys[:T, :B], zs[:T, :B]


def lem_reference(inputs, weights, weights_lin_z, bias, bias_lin_z, y0, z0, dt):
    """Pure-JAX reference (same math as the PyTorch module, lax.scan over time)."""
    def step(carry, x):
        y, z = carry
        X = jnp.concatenate([x, y], axis=1)
        multi = X @ weights.T + bias
        ms1, ms2, ms3 = jnp.split(multi, 3, axis=1)
        dt_bar = dt * jax.nn.sigmoid(ms1)
        dt_z = dt * jax.nn.sigmoid(ms2)
        new_z = (1.0 - dt_z) * z + dt_z * jnp.tanh(ms3)
        X2 = jnp.concatenate([x, new_z], axis=1)
        lin = X2 @ weights_lin_z.T + bias_lin_z
        new_y = (1.0 - dt_bar) * y + dt_bar * jnp.tanh(lin)
        return (new_y, new_z), (new_y, new_z)

    _, (ys, zs) = jax.lax.scan(step, (y0, z0), inputs)
    return ys, zs


if __name__ == "__main__":
    # Small, module-consistent shapes: seq=10, batch=4, ninp=8, nhid=32.
    # (T=10 with time_chunk=4 and B=4 exercises both time padding, the
    #  cross-chunk state carry, and batch padding to the sublane tile.)
    T, B, ninp, nhid = 10, 4, 8, 32
    dt = 1.0

    key = jax.random.PRNGKey(0)
    k_in, k_w, k_wz, k_b, k_bz = jax.random.split(key, 5)

    stdv = 1.0 / math.sqrt(nhid)   # matches reset_parameters()
    inputs = jax.random.normal(k_in, (T, B, ninp), dtype=jnp.float32)
    weights = jax.random.uniform(k_w, (3 * nhid, ninp + nhid),
                                 minval=-stdv, maxval=stdv, dtype=jnp.float32)
    weights_lin_z = jax.random.uniform(k_wz, (nhid, ninp + nhid),
                                       minval=-stdv, maxval=stdv, dtype=jnp.float32)
    bias = jax.random.uniform(k_b, (3 * nhid,),
                              minval=-stdv, maxval=stdv, dtype=jnp.float32)
    bias_lin_z = jax.random.uniform(k_bz, (nhid,),
                                    minval=-stdv, maxval=stdv, dtype=jnp.float32)

    # states=None path of LEMcuda.forward: zero initial y, z of shape (batch, nhid)
    y0 = jnp.zeros((B, nhid), dtype=jnp.float32)
    z0 = jnp.zeros((B, nhid), dtype=jnp.float32)

    # f32-weight path: tight numerical check against the scan reference.
    ys, zs = lem_forward(inputs, weights, weights_lin_z, bias, bias_lin_z,
                         y0, z0, dt, time_chunk=4)
    jax.block_until_ready((ys, zs))

    ys_ref, zs_ref = lem_reference(inputs, weights, weights_lin_z, bias,
                                   bias_lin_z, y0, z0, dt)
    np.testing.assert_allclose(np.asarray(ys), np.asarray(ys_ref),
                               rtol=1e-4, atol=1e-4)
    np.testing.assert_allclose(np.asarray(zs), np.asarray(zs_ref),
                               rtol=1e-4, atol=1e-4)

    # bf16 recurrent-weight path (f32 accumulation / state carry): loose sanity
    # check only — the algorithm itself is validated by the f32 path above.
    ys16, zs16 = lem_forward(inputs, weights, weights_lin_z, bias, bias_lin_z,
                             y0, z0, dt, time_chunk=4,
                             weight_dtype=jnp.bfloat16)
    jax.block_until_ready((ys16, zs16))
    np.testing.assert_allclose(np.asarray(ys16), np.asarray(ys_ref),
                               rtol=1e-1, atol=1e-1)
    np.testing.assert_allclose(np.asarray(zs16), np.asarray(zs_ref),
                               rtol=1e-1, atol=1e-1)

    # TODO(synk): custom autograd (lem_cuda.backward) is out of scope — forward only.
    print("KERNEL_OK")
</pallas_src>

<mosaic_0001>
module attributes {stable_mosaic.version = 11 : i64} {
  func.func @_lem_kernel(%arg0: i32, %arg1: i32, %arg2: memref<4x4x8x32xf32, #tpu.memory_space<vmem>>, %arg3: memref<4x32x32xf32, #tpu.memory_space<vmem>>, %arg4: memref<8x32xf32, #tpu.memory_space<vmem>>, %arg5: memref<8x32xf32, #tpu.memory_space<vmem>>, %arg6: memref<4x8x32xf32, #tpu.memory_space<vmem>>, %arg7: memref<4x8x32xf32, #tpu.memory_space<vmem>>, %arg8: memref<8x32xf32, #tpu.memory_space<vmem>>, %arg9: memref<8x32xf32, #tpu.memory_space<vmem>>) attributes {dimension_semantics = [#tpu.dimension_semantics<parallel>, #tpu.dimension_semantics<arbitrary>], iteration_bounds = array<i64: 1, 3>, scalar_prefetch = 0 : i64, scratch_operands = 2 : i64, tpu.core_type = #tpu.core_type<tc>, window_params = [{transform_indices = @transform_0, window_bounds = array<i64: 4, 4, 8, 32>}, {pipeline_mode = #tpu.pipeline_mode<synchronous>, transform_indices = @transform_1, window_bounds = array<i64: 4, 32, 32>}, {transform_indices = @transform_2, window_bounds = array<i64: 8, 32>}, {transform_indices = @transform_3, window_bounds = array<i64: 8, 32>}, {transform_indices = @transform_4, window_bounds = array<i64: 4, 8, 32>}, {transform_indices = @transform_5, window_bounds = array<i64: 4, 8, 32>}]} {
    %c0_i32 = arith.constant 0 : i32
    %0 = arith.cmpi eq, %arg1, %c0_i32 : i32
    %1 = arith.extui %0 : i1 to i32
    %c0_i32_0 = arith.constant 0 : i32
    %2 = arith.cmpi ne, %1, %c0_i32_0 : i32
    scf.if %2 {
      %c0_113 = arith.constant 0 : index
      %c0_114 = arith.constant 0 : index
      %215 = vector.load %arg4[%c0_113, %c0_114] : memref<8x32xf32, #tpu.memory_space<vmem>>, vector<8x32xf32>
      %c0_115 = arith.constant 0 : index
      %c0_116 = arith.constant 0 : index
      %216 = vector.load %arg8[%c0_115, %c0_116] : memref<8x32xf32, #tpu.memory_space<vmem>>, vector<8x32xf32>
      tpu.vector_store %arg8[%c0_115, %c0_116], %215 {strides = array<i32>} : memref<8x32xf32, #tpu.memory_space<vmem>>, vector<8x32xf32>,
      %c0_117 = arith.constant 0 : index
      %c0_118 = arith.constant 0 : index
      %217 = vector.load %arg5[%c0_117, %c0_118] : memref<8x32xf32, #tpu.memory_space<vmem>>, vector<8x32xf32>
      %c0_119 = arith.constant 0 : index
      %c0_120 = arith.constant 0 : index
      %218 = vector.load %arg9[%c0_119, %c0_120] : memref<8x32xf32, #tpu.memory_space<vmem>>, vector<8x32xf32>
      tpu.vector_store %arg9[%c0_119, %c0_120], %217 {strides = array<i32>} : memref<8x32xf32, #tpu.memory_space<vmem>>, vector<8x32xf32>,
    } else {
    }
    %c0 = arith.constant 0 : index
    %c0_1 = arith.constant 0 : index
    %c0_2 = arith.constant 0 : index
    %3 = vector.load %arg3[%c0, %c0_1, %c0_2] : memref<4x32x32xf32, #tpu.memory_space<vmem>>, vector<1x32x32xf32>
    %4 = vector.shape_cast %3 : vector<1x32x32xf32> to vector<32x32xf32>
    %c1 = arith.constant 1 : index
    %c0_3 = arith.constant 0 : index
    %c0_4 = arith.constant 0 : index
    %5 = vector.load %arg3[%c1, %c0_3, %c0_4] : memref<4x32x32xf32, #tpu.memory_space<vmem>>, vector<1x32x32xf32>
    %6 = vector.shape_cast %5 : vector<1x32x32xf32> to vector<32x32xf32>
    %c2 = arith.constant 2 : index
    %c0_5 = arith.constant 0 : index
    %c0_6 = arith.constant 0 : index
    %7 = vector.load %arg3[%c2, %c0_5, %c0_6] : memref<4x32x32xf32, #tpu.memory_space<vmem>>, vector<1x32x32xf32>
    %8 = vector.shape_cast %7 : vector<1x32x32xf32> to vector<32x32xf32>
    %c3 = arith.constant 3 : index
    %c0_7 = arith.constant 0 : index
    %c0_8 = arith.constant 0 : index
    %9 = vector.load %arg3[%c3, %c0_7, %c0_8] : memref<4x32x32xf32, #tpu.memory_space<vmem>>, vector<1x32x32xf32>
    %10 = vector.shape_cast %9 : vector<1x32x32xf32> to vector<32x32xf32>
    %c0_9 = arith.constant 0 : index
    %c0_10 = arith.constant 0 : index
    %11 = vector.load %arg8[%c0_9, %c0_10] : memref<8x32xf32, #tpu.memory_space<vmem>>, vector<8x32xf32>
    %c0_11 = arith.constant 0 : index
    %c0_12 = arith.constant 0 : index
    %12 = vector.load %arg9[%c0_11, %c0_12] : memref<8x32xf32, #tpu.memory_space<vmem>>, vector<8x32xf32>
    %c0_i32_13 = arith.constant 0 : i32
    %13 = arith.index_cast %c0_i32_13 : i32 to index
    %c0_14 = arith.constant 0 : index
    %c0_15 = arith.constant 0 : index
    %c0_16 = arith.constant 0 : index
    %14 = vector.load %arg2[%13, %c0_14, %c0_15, %c0_16] : memref<4x4x8x32xf32, #tpu.memory_space<vmem>>, vector<1x1x8x32xf32>
    %15 = vector.shape_cast %14 : vector<1x1x8x32xf32> to vector<8x32xf32>
    %cst = arith.constant dense<0.000000e+00> : vector<8x32xf32>
    %16 = tpu.matmul %11, %4, %cst {dimension_numbers = #tpu.dot_dimension_numbers<[1], [0], [0], [1], [0, 0, 1, 1], [], []>} : vector<8x32xf32>, vector<32x32xf32>, vector<8x32xf32> -> vector<8x32xf32>
    %17 = arith.addf %15, %16 : vector<8x32xf32>
    %18 = arith.index_cast %c0_i32_13 : i32 to index
    %c1_17 = arith.constant 1 : index
    %c0_18 = arith.constant 0 : index
    %c0_19 = arith.constant 0 : index
    %19 = vector.load %arg2[%18, %c1_17, %c0_18, %c0_19] : memref<4x4x8x32xf32, #tpu.memory_space<vmem>>, vector<1x1x8x32xf32>
    %20 = vector.shape_cast %19 : vector<1x1x8x32xf32> to vector<8x32xf32>
    %cst_20 = arith.constant dense<0.000000e+00> : vector<8x32xf32>
    %21 = tpu.matmul %11, %6, %cst_20 {dimension_numbers = #tpu.dot_dimension_numbers<[1], [0], [0], [1], [0, 0, 1, 1], [], []>} : vector<8x32xf32>, vector<32x32xf32>, vector<8x32xf32> -> vector<8x32xf32>
    %22 = arith.addf %20, %21 : vector<8x32xf32>
    %23 = arith.index_cast %c0_i32_13 : i32 to index
    %c2_21 = arith.constant 2 : index
    %c0_22 = arith.constant 0 : index
    %c0_23 = arith.constant 0 : index
    %24 = vector.load %arg2[%23, %c2_21, %c0_22, %c0_23] : memref<4x4x8x32xf32, #tpu.memory_space<vmem>>, vector<1x1x8x32xf32>
    %25 = vector.shape_cast %24 : vector<1x1x8x32xf32> to vector<8x32xf32>
    %cst_24 = arith.constant dense<0.000000e+00> : vector<8x32xf32>
    %26 = tpu.matmul %11, %8, %cst_24 {dimension_numbers = #tpu.dot_dimension_numbers<[1], [0], [0], [1], [0, 0, 1, 1], [], []>} : vector<8x32xf32>, vector<32x32xf32>, vector<8x32xf32> -> vector<8x32xf32>
    %27 = arith.addf %25, %26 : vector<8x32xf32>
    %28 = arith.negf %17 : vector<8x32xf32>
    %29 = math.exp %28 : vector<8x32xf32>
    %cst_25 = arith.constant 1.000000e+00 : f32
    %30 = vector.broadcast %cst_25 : f32 to vector<8x32xf32>
    %31 = arith.addf %30, %29 : vector<8x32xf32>
    %32 = arith.divf %30, %31 : vector<8x32xf32>
    %cst_26 = arith.constant 1.000000e+00 : f32
    %33 = vector.broadcast %cst_26 : f32 to vector<8x32xf32>
    %34 = arith.mulf %33, %32 : vector<8x32xf32>
    %35 = arith.negf %22 : vector<8x32xf32>
    %36 = math.exp %35 : vector<8x32xf32>
    %cst_27 = arith.constant 1.000000e+00 : f32
    %37 = vector.broadcast %cst_27 : f32 to vector<8x32xf32>
    %38 = arith.addf %37, %36 : vector<8x32xf32>
    %39 = arith.divf %37, %38 : vector<8x32xf32>
    %cst_28 = arith.constant 1.000000e+00 : f32
    %40 = vector.broadcast %cst_28 : f32 to vector<8x32xf32>
    %41 = arith.mulf %40, %39 : vector<8x32xf32>
    %42 = math.tanh %27 : vector<8x32xf32>
    %43 = arith.subf %42, %12 : vector<8x32xf32>
    %44 = arith.mulf %41, %43 : vector<8x32xf32>
    %45 = arith.addf %12, %44 : vector<8x32xf32>
    %46 = arith.index_cast %c0_i32_13 : i32 to index
    %c3_29 = arith.constant 3 : index
    %c0_30 = arith.constant 0 : index
    %c0_31 = arith.constant 0 : index
    %47 = vector.load %arg2[%46, %c3_29, %c0_30, %c0_31] : memref<4x4x8x32xf32, #tpu.memory_space<vmem>>, vector<1x1x8x32xf32>
    %48 = vector.shape_cast %47 : vector<1x1x8x32xf32> to vector<8x32xf32>
    %cst_32 = arith.constant dense<0.000000e+00> : vector<8x32xf32>
    %49 = tpu.matmul %45, %10, %cst_32 {dimension_numbers = #tpu.dot_dimension_numbers<[1], [0], [0], [1], [0, 0, 1, 1], [], []>} : vector<8x32xf32>, vector<32x32xf32>, vector<8x32xf32> -> vector<8x32xf32>
    %50 = arith.addf %48, %49 : vector<8x32xf32>
    %51 = math.tanh %50 : vector<8x32xf32>
    %52 = arith.subf %51, %11 : vector<8x32xf32>
    %53 = arith.mulf %34, %52 : vector<8x32xf32>
    %54 = arith.addf %11, %53 : vector<8x32xf32>
    %55 = arith.index_cast %c0_i32_13 : i32 to index
    %c0_33 = arith.constant 0 : index
    %c0_34 = arith.constant 0 : index
    %56 = vector.load %arg6[%55, %c0_33, %c0_34] : memref<4x8x32xf32, #tpu.memory_space<vmem>>, vector<1x8x32xf32>
    %57 = vector.shape_cast %56 : vector<1x8x32xf32> to vector<8x32xf32>
    %58 = vector.shape_cast %54 : vector<8x32xf32> to vector<1x8x32xf32>
    tpu.vector_store %arg6[%55, %c0_33, %c0_34], %58 {strides = array<i32>} : memref<4x8x32xf32, #tpu.memory_space<vmem>>, vector<1x8x32xf32>,
    %59 = arith.index_cast %c0_i32_13 : i32 to index
    %c0_35 = arith.constant 0 : index
    %c0_36 = arith.constant 0 : index
    %60 = vector.load %arg7[%59, %c0_35, %c0_36] : memref<4x8x32xf32, #tpu.memory_space<vmem>>, vector<1x8x32xf32>
    %61 = vector.shape_cast %60 : vector<1x8x32xf32> to vector<8x32xf32>
    %62 = vector.shape_cast %45 : vector<8x32xf32> to vector<1x8x32xf32>
    tpu.vector_store %arg7[%59, %c0_35, %c0_36], %62 {strides = array<i32>} : memref<4x8x32xf32, #tpu.memory_space<vmem>>, vector<1x8x32xf32>,
    %c1_i32 = arith.constant 1 : i32
    %63 = arith.index_cast %c1_i32 : i32 to index
    %c0_37 = arith.constant 0 : index
    %c0_38 = arith.constant 0 : index
    %c0_39 = arith.constant 0 : index
    %64 = vector.load %arg2[%63, %c0_37, %c0_38, %c0_39] : memref<4x4x8x32xf32, #tpu.memory_space<vmem>>, vector<1x1x8x32xf32>
    %65 = vector.shape_cast %64 : vector<1x1x8x32xf32> to vector<8x32xf32>
    %cst_40 = arith.constant dense<0.000000e+00> : vector<8x32xf32>
    %66 = tpu.matmul %54, %4, %cst_40 {dimension_numbers = #tpu.dot_dimension_numbers<[1], [0], [0], [1], [0, 0, 1, 1], [], []>} : vector<8x32xf32>, vector<32x32xf32>, vector<8x32xf32> -> vector<8x32xf32>
    %67 = arith.addf %65, %66 : vector<8x32xf32>
    %68 = arith.index_cast %c1_i32 : i32 to index
    %c1_41 = arith.constant 1 : index
    %c0_42 = arith.constant 0 : index
    %c0_43 = arith.constant 0 : index
    %69 = vector.load %arg2[%68, %c1_41, %c0_42, %c0_43] : memref<4x4x8x32xf32, #tpu.memory_space<vmem>>, vector<1x1x8x32xf32>
    %70 = vector.shape_cast %69 : vector<1x1x8x32xf32> to vector<8x32xf32>
    %cst_44 = arith.constant dense<0.000000e+00> : vector<8x32xf32>
    %71 = tpu.matmul %54, %6, %cst_44 {dimension_numbers = #tpu.dot_dimension_numbers<[1], [0], [0], [1], [0, 0, 1, 1], [], []>} : vector<8x32xf32>, vector<32x32xf32>, vector<8x32xf32> -> vector<8x32xf32>
    %72 = arith.addf %70, %71 : vector<8x32xf32>
    %73 = arith.index_cast %c1_i32 : i32 to index
    %c2_45 = arith.constant 2 : index
    %c0_46 = arith.constant 0 : index
    %c0_47 = arith.constant 0 : index
    %74 = vector.load %arg2[%73, %c2_45, %c0_46, %c0_47] : memref<4x4x8x32xf32, #tpu.memory_space<vmem>>, vector<1x1x8x32xf32>
    %75 = vector.shape_cast %74 : vector<1x1x8x32xf32> to vector<8x32xf32>
    %cst_48 = arith.constant dense<0.000000e+00> : vector<8x32xf32>
    %76 = tpu.matmul %54, %8, %cst_48 {dimension_numbers = #tpu.dot_dimension_numbers<[1], [0], [0], [1], [0, 0, 1, 1], [], []>} : vector<8x32xf32>, vector<32x32xf32>, vector<8x32xf32> -> vector<8x32xf32>
    %77 = arith.addf %75, %76 : vector<8x32xf32>
    %78 = arith.negf %67 : vector<8x32xf32>
    %79 = math.exp %78 : vector<8x32xf32>
    %cst_49 = arith.constant 1.000000e+00 : f32
    %80 = vector.broadcast %cst_49 : f32 to vector<8x32xf32>
    %81 = arith.addf %80, %79 : vector<8x32xf32>
    %82 = arith.divf %80, %81 : vector<8x32xf32>
    %cst_50 = arith.constant 1.000000e+00 : f32
    %83 = vector.broadcast %cst_50 : f32 to vector<8x32xf32>
    %84 = arith.mulf %83, %82 : vector<8x32xf32>
    %85 = arith.negf %72 : vector<8x32xf32>
    %86 = math.exp %85 : vector<8x32xf32>
    %cst_51 = arith.constant 1.000000e+00 : f32
    %87 = vector.broadcast %cst_51 : f32 to vector<8x32xf32>
    %88 = arith.addf %87, %86 : vector<8x32xf32>
    %89 = arith.divf %87, %88 : vector<8x32xf32>
    %cst_52 = arith.constant 1.000000e+00 : f32
    %90 = vector.broadcast %cst_52 : f32 to vector<8x32xf32>
    %91 = arith.mulf %90, %89 : vector<8x32xf32>
    %92 = math.tanh %77 : vector<8x32xf32>
    %93 = arith.subf %92, %45 : vector<8x32xf32>
    %94 = arith.mulf %91, %93 : vector<8x32xf32>
    %95 = arith.addf %45, %94 : vector<8x32xf32>
    %96 = arith.index_cast %c1_i32 : i32 to index
    %c3_53 = arith.constant 3 : index
    %c0_54 = arith.constant 0 : index
    %c0_55 = arith.constant 0 : index
    %97 = vector.load %arg2[%96, %c3_53, %c0_54, %c0_55] : memref<4x4x8x32xf32, #tpu.memory_space<vmem>>, vector<1x1x8x32xf32>
    %98 = vector.shape_cast %97 : vector<1x1x8x32xf32> to vector<8x32xf32>
    %cst_56 = arith.constant dense<0.000000e+00> : vector<8x32xf32>
    %99 = tpu.matmul %95, %10, %cst_56 {dimension_numbers = #tpu.dot_dimension_numbers<[1], [0], [0], [1], [0, 0, 1, 1], [], []>} : vector<8x32xf32>, vector<32x32xf32>, vector<8x32xf32> -> vector<8x32xf32>
    %100 = arith.addf %98, %99 : vector<8x32xf32>
    %101 = math.tanh %100 : vector<8x32xf32>
    %102 = arith.subf %101, %54 : vector<8x32xf32>
    %103 = arith.mulf %84, %102 : vector<8x32xf32>
    %104 = arith.addf %54, %103 : vector<8x32xf32>
    %105 = arith.index_cast %c1_i32 : i32 to index
    %c0_57 = arith.constant 0 : index
    %c0_58 = arith.constant 0 : index
    %106 = vector.load %arg6[%105, %c0_57, %c0_58] : memref<4x8x32xf32, #tpu.memory_space<vmem>>, vector<1x8x32xf32>
    %107 = vector.shape_cast %106 : vector<1x8x32xf32> to vector<8x32xf32>
    %108 = vector.shape_cast %104 : vector<8x32xf32> to vector<1x8x32xf32>
    tpu.vector_store %arg6[%105, %c0_57, %c0_58], %108 {strides = array<i32>} : memref<4x8x32xf32, #tpu.memory_space<vmem>>, vector<1x8x32xf32>,
    %109 = arith.index_cast %c1_i32 : i32 to index
    %c0_59 = arith.constant 0 : index
    %c0_60 = arith.constant 0 : index
    %110 = vector.load %arg7[%109, %c0_59, %c0_60] : memref<4x8x32xf32, #tpu.memory_space<vmem>>, vector<1x8x32xf32>
    %111 = vector.shape_cast %110 : vector<1x8x32xf32> to vector<8x32xf32>
    %112 = vector.shape_cast %95 : vector<8x32xf32> to vector<1x8x32xf32>
    tpu.vector_store %arg7[%109, %c0_59, %c0_60], %112 {strides = array<i32>} : memref<4x8x32xf32, #tpu.memory_space<vmem>>, vector<1x8x32xf32>,
    %c2_i32 = arith.constant 2 : i32
    %113 = arith.index_cast %c2_i32 : i32 to index
    %c0_61 = arith.constant 0 : index
    %c0_62 = arith.constant 0 : index
    %c0_63 = arith.constant 0 : index
    %114 = vector.load %arg2[%113, %c0_61, %c0_62, %c0_63] : memref<4x4x8x32xf32, #tpu.memory_space<vmem>>, vector<1x1x8x32xf32>
    %115 = vector.shape_cast %114 : vector<1x1x8x32xf32> to vector<8x32xf32>
    %cst_64 = arith.constant dense<0.000000e+00> : vector<8x32xf32>
    %116 = tpu.matmul %104, %4, %cst_64 {dimension_numbers = #tpu.dot_dimension_numbers<[1], [0], [0], [1], [0, 0, 1, 1], [], []>} : vector<8x32xf32>, vector<32x32xf32>, vector<8x32xf32> -> vector<8x32xf32>
    %117 = arith.addf %115, %116 : vector<8x32xf32>
    %118 = arith.index_cast %c2_i32 : i32 to index
    %c1_65 = arith.constant 1 : index
    %c0_66 = arith.constant 0 : index
    %c0_67 = arith.constant 0 : index
    %119 = vector.load %arg2[%118, %c1_65, %c0_66, %c0_67] : memref<4x4x8x32xf32, #tpu.memory_space<vmem>>, vector<1x1x8x32xf32>
    %120 = vector.shape_cast %119 : vector<1x1x8x32xf32> to vector<8x32xf32>
    %cst_68 = arith.constant dense<0.000000e+00> : vector<8x32xf32>
    %121 = tpu.matmul %104, %6, %cst_68 {dimension_numbers = #tpu.dot_dimension_numbers<[1], [0], [0], [1], [0, 0, 1, 1], [], []>} : vector<8x32xf32>, vector<32x32xf32>, vector<8x32xf32> -> vector<8x32xf32>
    %122 = arith.addf %120, %121 : vector<8x32xf32>
    %123 = arith.index_cast %c2_i32 : i32 to index
    %c2_69 = arith.constant 2 : index
    %c0_70 = arith.constant 0 : index
    %c0_71 = arith.constant 0 : index
    %124 = vector.load %arg2[%123, %c2_69, %c0_70, %c0_71] : memref<4x4x8x32xf32, #tpu.memory_space<vmem>>, vector<1x1x8x32xf32>
    %125 = vector.shape_cast %124 : vector<1x1x8x32xf32> to vector<8x32xf32>
    %cst_72 = arith.constant dense<0.000000e+00> : vector<8x32xf32>
    %126 = tpu.matmul %104, %8, %cst_72 {dimension_numbers = #tpu.dot_dimension_numbers<[1], [0], [0], [1], [0, 0, 1, 1], [], []>} : vector<8x32xf32>, vector<32x32xf32>, vector<8x32xf32> -> vector<8x32xf32>
    %127 = arith.addf %125, %126 : vector<8x32xf32>
    %128 = arith.negf %117 : vector<8x32xf32>
    %129 = math.exp %128 : vector<8x32xf32>
    %cst_73 = arith.constant 1.000000e+00 : f32
    %130 = vector.broadcast %cst_73 : f32 to vector<8x32xf32>
    %131 = arith.addf %130, %129 : vector<8x32xf32>
    %132 = arith.divf %130, %131 : vector<8x32xf32>
    %cst_74 = arith.constant 1.000000e+00 : f32
    %133 = vector.broadcast %cst_74 : f32 to vector<8x32xf32>
    %134 = arith.mulf %133, %132 : vector<8x32xf32>
    %135 = arith.negf %122 : vector<8x32xf32>
    %136 = math.exp %135 : vector<8x32xf32>
    %cst_75 = arith.constant 1.000000e+00 : f32
    %137 = vector.broadcast %cst_75 : f32 to vector<8x32xf32>
    %138 = arith.addf %137, %136 : vector<8x32xf32>
    %139 = arith.divf %137, %138 : vector<8x32xf32>
    %cst_76 = arith.constant 1.000000e+00 : f32
    %140 = vector.broadcast %cst_76 : f32 to vector<8x32xf32>
    %141 = arith.mulf %140, %139 : vector<8x32xf32>
    %142 = math.tanh %127 : vector<8x32xf32>
    %143 = arith.subf %142, %95 : vector<8x32xf32>
    %144 = arith.mulf %141, %143 : vector<8x32xf32>
    %145 = arith.addf %95, %144 : vector<8x32xf32>
    %146 = arith.index_cast %c2_i32 : i32 to index
    %c3_77 = arith.constant 3 : index
    %c0_78 = arith.constant 0 : index
    %c0_79 = arith.constant 0 : index
    %147 = vector.load %arg2[%146, %c3_77, %c0_78, %c0_79] : memref<4x4x8x32xf32, #tpu.memory_space<vmem>>, vector<1x1x8x32xf32>
    %148 = vector.shape_cast %147 : vector<1x1x8x32xf32> to vector<8x32xf32>
    %cst_80 = arith.constant dense<0.000000e+00> : vector<8x32xf32>
    %149 = tpu.matmul %145, %10, %cst_80 {dimension_numbers = #tpu.dot_dimension_numbers<[1], [0], [0], [1], [0, 0, 1, 1], [], []>} : vector<8x32xf32>, vector<32x32xf32>, vector<8x32xf32> -> vector<8x32xf32>
    %150 = arith.addf %148, %149 : vector<8x32xf32>
    %151 = math.tanh %150 : vector<8x32xf32>
    %152 = arith.subf %151, %104 : vector<8x32xf32>
    %153 = arith.mulf %134, %152 : vector<8x32xf32>
    %154 = arith.addf %104, %153 : vector<8x32xf32>
    %155 = arith.index_cast %c2_i32 : i32 to index
    %c0_81 = arith.constant 0 : index
    %c0_82 = arith.constant 0 : index
    %156 = vector.load %arg6[%155, %c0_81, %c0_82] : memref<4x8x32xf32, #tpu.memory_space<vmem>>, vector<1x8x32xf32>
    %157 = vector.shape_cast %156 : vector<1x8x32xf32> to vector<8x32xf32>
    %158 = vector.shape_cast %154 : vector<8x32xf32> to vector<1x8x32xf32>
    tpu.vector_store %arg6[%155, %c0_81, %c0_82], %158 {strides = array<i32>} : memref<4x8x32xf32, #tpu.memory_space<vmem>>, vector<1x8x32xf32>,
    %159 = arith.index_cast %c2_i32 : i32 to index
    %c0_83 = arith.constant 0 : index
    %c0_84 = arith.constant 0 : index
    %160 = vector.load %arg7[%159, %c0_83, %c0_84] : memref<4x8x32xf32, #tpu.memory_space<vmem>>, vector<1x8x32xf32>
    %161 = vector.shape_cast %160 : vector<1x8x32xf32> to vector<8x32xf32>
    %162 = vector.shape_cast %145 : vector<8x32xf32> to vector<1x8x32xf32>
    tpu.vector_store %arg7[%159, %c0_83, %c0_84], %162 {strides = array<i32>} : memref<4x8x32xf32, #tpu.memory_space<vmem>>, vector<1x8x32xf32>,
    %c3_i32 = arith.constant 3 : i32
    %163 = arith.index_cast %c3_i32 : i32 to index
    %c0_85 = arith.constant 0 : index
    %c0_86 = arith.constant 0 : index
    %c0_87 = arith.constant 0 : index
    %164 = vector.load %arg2[%163, %c0_85, %c0_86, %c0_87] : memref<4x4x8x32xf32, #tpu.memory_space<vmem>>, vector<1x1x8x32xf32>
    %165 = vector.shape_cast %164 : vector<1x1x8x32xf32> to vector<8x32xf32>
    %cst_88 = arith.constant dense<0.000000e+00> : vector<8x32xf32>
    %166 = tpu.matmul %154, %4, %cst_88 {dimension_numbers = #tpu.dot_dimension_numbers<[1], [0], [0], [1], [0, 0, 1, 1], [], []>} : vector<8x32xf32>, vector<32x32xf32>, vector<8x32xf32> -> vector<8x32xf32>
    %167 = arith.addf %165, %166 : vector<8x32xf32>
    %168 = arith.index_cast %c3_i32 : i32 to index
    %c1_89 = arith.constant 1 : index
    %c0_90 = arith.constant 0 : index
    %c0_91 = arith.constant 0 : index
    %169 = vector.load %arg2[%168, %c1_89, %c0_90, %c0_91] : memref<4x4x8x32xf32, #tpu.memory_space<vmem>>, vector<1x1x8x32xf32>
    %170 = vector.shape_cast %169 : vector<1x1x8x32xf32> to vector<8x32xf32>
    %cst_92 = arith.constant dense<0.000000e+00> : vector<8x32xf32>
    %171 = tpu.matmul %154, %6, %cst_92 {dimension_numbers = #tpu.dot_dimension_numbers<[1], [0], [0], [1], [0, 0, 1, 1], [], []>} : vector<8x32xf32>, vector<32x32xf32>, vector<8x32xf32> -> vector<8x32xf32>
    %172 = arith.addf %170, %171 : vector<8x32xf32>
    %173 = arith.index_cast %c3_i32 : i32 to index
    %c2_93 = arith.constant 2 : index
    %c0_94 = arith.constant 0 : index
    %c0_95 = arith.constant 0 : index
    %174 = vector.load %arg2[%173, %c2_93, %c0_94, %c0_95] : memref<4x4x8x32xf32, #tpu.memory_space<vmem>>, vector<1x1x8x32xf32>
    %175 = vector.shape_cast %174 : vector<1x1x8x32xf32> to vector<8x32xf32>
    %cst_96 = arith.constant dense<0.000000e+00> : vector<8x32xf32>
    %176 = tpu.matmul %154, %8, %cst_96 {dimension_numbers = #tpu.dot_dimension_numbers<[1], [0], [0], [1], [0, 0, 1, 1], [], []>} : vector<8x32xf32>, vector<32x32xf32>, vector<8x32xf32> -> vector<8x32xf32>
    %177 = arith.addf %175, %176 : vector<8x32xf32>
    %178 = arith.negf %167 : vector<8x32xf32>
    %179 = math.exp %178 : vector<8x32xf32>
    %cst_97 = arith.constant 1.000000e+00 : f32
    %180 = vector.broadcast %cst_97 : f32 to vector<8x32xf32>
    %181 = arith.addf %180, %179 : vector<8x32xf32>
    %182 = arith.divf %180, %181 : vector<8x32xf32>
    %cst_98 = arith.constant 1.000000e+00 : f32
    %183 = vector.broadcast %cst_98 : f32 to vector<8x32xf32>
    %184 = arith.mulf %183, %182 : vector<8x32xf32>
    %185 = arith.negf %172 : vector<8x32xf32>
    %186 = math.exp %185 : vector<8x32xf32>
    %cst_99 = arith.constant 1.000000e+00 : f32
    %187 = vector.broadcast %cst_99 : f32 to vector<8x32xf32>
    %188 = arith.addf %187, %186 : vector<8x32xf32>
    %189 = arith.divf %187, %188 : vector<8x32xf32>
    %cst_100 = arith.constant 1.000000e+00 : f32
    %190 = vector.broadcast %cst_100 : f32 to vector<8x32xf32>
    %191 = arith.mulf %190, %189 : vector<8x32xf32>
    %192 = math.tanh %177 : vector<8x32xf32>
    %193 = arith.subf %192, %145 : vector<8x32xf32>
    %194 = arith.mulf %191, %193 : vector<8x32xf32>
    %195 = arith.addf %145, %194 : vector<8x32xf32>
    %196 = arith.index_cast %c3_i32 : i32 to index
    %c3_101 = arith.constant 3 : index
    %c0_102 = arith.constant 0 : index
    %c0_103 = arith.constant 0 : index
    %197 = vector.load %arg2[%196, %c3_101, %c0_102, %c0_103] : memref<4x4x8x32xf32, #tpu.memory_space<vmem>>, vector<1x1x8x32xf32>
    %198 = vector.shape_cast %197 : vector<1x1x8x32xf32> to vector<8x32xf32>
    %cst_104 = arith.constant dense<0.000000e+00> : vector<8x32xf32>
    %199 = tpu.matmul %195, %10, %cst_104 {dimension_numbers = #tpu.dot_dimension_numbers<[1], [0], [0], [1], [0, 0, 1, 1], [], []>} : vector<8x32xf32>, vector<32x32xf32>, vector<8x32xf32> -> vector<8x32xf32>
    %200 = arith.addf %198, %199 : vector<8x32xf32>
    %201 = math.tanh %200 : vector<8x32xf32>
    %202 = arith.subf %201, %154 : vector<8x32xf32>
    %203 = arith.mulf %184, %202 : vector<8x32xf32>
    %204 = arith.addf %154, %203 : vector<8x32xf32>
    %205 = arith.index_cast %c3_i32 : i32 to index
    %c0_105 = arith.constant 0 : index
    %c0_106 = arith.constant 0 : index
    %206 = vector.load %arg6[%205, %c0_105, %c0_106] : memref<4x8x32xf32, #tpu.memory_space<vmem>>, vector<1x8x32xf32>
    %207 = vector.shape_cast %206 : vector<1x8x32xf32> to vector<8x32xf32>
    %208 = vector.shape_cast %204 : vector<8x32xf32> to vector<1x8x32xf32>
    tpu.vector_store %arg6[%205, %c0_105, %c0_106], %208 {strides = array<i32>} : memref<4x8x32xf32, #tpu.memory_space<vmem>>, vector<1x8x32xf32>,
    %209 = arith.index_cast %c3_i32 : i32 to index
    %c0_107 = arith.constant 0 : index
    %c0_108 = arith.constant 0 : index
    %210 = vector.load %arg7[%209, %c0_107, %c0_108] : memref<4x8x32xf32, #tpu.memory_space<vmem>>, vector<1x8x32xf32>
    %211 = vector.shape_cast %210 : vector<1x8x32xf32> to vector<8x32xf32>
    %212 = vector.shape_cast %195 : vector<8x32xf32> to vector<1x8x32xf32>
    tpu.vector_store %arg7[%209, %c0_107, %c0_108], %212 {strides = array<i32>} : memref<4x8x32xf32, #tpu.memory_space<vmem>>, vector<1x8x32xf32>,
    %c4_i32 = arith.constant 4 : i32
    %c0_109 = arith.constant 0 : index
    %c0_110 = arith.constant 0 : index
    %213 = vector.load %arg8[%c0_109, %c0_110] : memref<8x32xf32, #tpu.memory_space<vmem>>, vector<8x32xf32>
    tpu.vector_store %arg8[%c0_109, %c0_110], %204 {strides = array<i32>} : memref<8x32xf32, #tpu.memory_space<vmem>>, vector<8x32xf32>,
    %c0_111 = arith.constant 0 : index
    %c0_112 = arith.constant 0 : index
    %214 = vector.load %arg9[%c0_111, %c0_112] : memref<8x32xf32, #tpu.memory_space<vmem>>, vector<8x32xf32>
    tpu.vector_store %arg9[%c0_111, %c0_112], %195 {strides = array<i32>} : memref<8x32xf32, #tpu.memory_space<vmem>>, vector<8x32xf32>,
    return
  }
  func.func @transform_0(%arg0: i32, %arg1: i32) -> (i32, i32, i32, i32) {
    %c0_i32 = arith.constant 0 : i32
    %c0_i32_0 = arith.constant 0 : i32
    %c0_i32_1 = arith.constant 0 : i32
    return %arg1, %c0_i32, %arg0, %c0_i32_0 : i32, i32, i32, i32
  }
  func.func @transform_1(%arg0: i32, %arg1: i32) -> (i32, i32, i32) {
    %c0_i32 = arith.constant 0 : i32
    %c0_i32_0 = arith.constant 0 : i32
    %c0_i32_1 = arith.constant 0 : i32
    %c0_i32_2 = arith.constant 0 : i32
    return %c0_i32, %c0_i32_0, %c0_i32_1 : i32, i32, i32
  }
  func.func @transform_2(%arg0: i32, %arg1: i32) -> (i32, i32) {
    %c0_i32 = arith.constant 0 : i32
    %c0_i32_0 = arith.constant 0 : i32
    return %arg0, %c0_i32 : i32, i32
  }
  func.func @transform_3(%arg0: i32, %arg1: i32) -> (i32, i32) {
    %c0_i32 = arith.constant 0 : i32
    %c0_i32_0 = arith.constant 0 : i32
    return %arg0, %c0_i32 : i32, i32
  }
  func.func @transform_4(%arg0: i32, %arg1: i32) -> (i32, i32, i32) {
    %c0_i32 = arith.constant 0 : i32
    %c0_i32_0 = arith.constant 0 : i32
    return %arg1, %arg0, %c0_i32 : i32, i32, i32
  }
  func.func @transform_5(%arg0: i32, %arg1: i32) -> (i32, i32, i32) {
    %c0_i32 = arith.constant 0 : i32
    %c0_i32_0 = arith.constant 0 : i32
    return %arg1, %arg0, %c0_i32 : i32, i32, i32
  }
}

</mosaic_0001>

<llo_original>
// kernel: tpu_custom_call.1
$region0: #{tpu_custom_call.1}
  #allocation0 [shape = 'u32[]', space=smem, size = 0x4, offset = 0x4, fixed_abs, tag = 'smem constant byte address 0x4 - core index']
  #allocation1 [shape = 'u32[72,128]{1,0:T(1,128)}', space=vmem, size = 0x9000, scoped, tag = 'internal scratch']
  #allocation2 [shape = 'f32[8,32]{1,0:T(8,128)}', space=vmem, size = 0x1000, scoped, tag = 'scratch operand']
  #allocation3 [shape = 'f32[8,32]{1,0:T(8,128)}', space=vmem, size = 0x1000, scoped, tag = 'scratch operand']
  %s0 = inlined_call_operand.hbm [shape: f32[12,4,8,32], index: 0, kind: input, shape index: {}]
  %s1 = inlined_call_operand.hbm [shape: f32[4,32,32], index: 1, kind: input, shape index: {}]
  %s2 = inlined_call_operand.hbm [shape: f32[8,32], index: 2, kind: input, shape index: {}]
  %s3 = inlined_call_operand.hbm [shape: f32[8,32], index: 3, kind: input, shape index: {}]
  %s4 = inlined_call_operand.hbm [shape: f32[12,8,32], index: 4, kind: output, shape index: {0}]
  %s5 = inlined_call_operand.hbm [shape: f32[12,8,32], index: 5, kind: output, shape index: {1}]
  %6 = xla_tuple %s4, %s5
  %s7 = sld [smem:[#allocation0]]
  $region77: #{tpu_custom_call.1} parent=0
    _
  %s9 = ssub.s32 1, %s7
  %s10 = scalar_select 0, %s9, %s7
  $region1: #{tpu_custom_call.1} parent=0
    #allocation4 [shape = 'u8[131072]{0}', space=vmem, size = 0x20000, scoped, tag = 'input window, operand 0']
    #allocation5 [shape = 's32[2]{0}', space=sflag, size = 0x8, scoped, tag = 'scoped memory for tpu_custom_call.1']
    #allocation6 [shape = 's32[2]{0}', space=sflag, size = 0x8, scoped, tag = 'scoped memory for tpu_custom_call.1']
    #allocation7 [shape = 'u8[65536]{0}', space=vmem, size = 0x10000, scoped, tag = 'input window, operand 1, single buffered']
    #allocation8 [shape = 's32[1]{0}', space=sflag, size = 0x4, scoped, tag = 'scoped memory for tpu_custom_call.1']
    #allocation9 [shape = 'u8[4096]{0}', space=vmem, size = 0x1000, scoped, tag = 'input window, operand 2, single buffered']
    #allocation10 [shape = 'u8[4096]{0}', space=vmem, size = 0x1000, scoped, tag = 'input window, operand 3, single buffered']
    #allocation11 [shape = 's32[1]{0}', space=sflag, size = 0x4, scoped, tag = 'scoped memory for tpu_custom_call.1']
    #allocation12 [shape = 'u8[32768]{0}', space=vmem, size = 0x8000, scoped, tag = 'output window, operand 0']
    #allocation13 [shape = 'u8[32768]{0}', space=vmem, size = 0x8000, scoped, tag = 'output window, operand 1']
    #allocation14 [shape = 's32[2]{0}', space=sflag, size = 0x8, scoped, tag = 'scoped memory for tpu_custom_call.1']
    %11 = vsyncpa [#allocation5], 0
    %s12 = scalar_lea.sflag [#allocation5], 1
    %13 = vsyncpa %s12, 0
    %14 = vsyncpa [#allocation8], 0
    %15 = vsyncpa [#allocation11], 0
    %16 = vsyncpa [#allocation6], 0
    %s17 = scalar_lea.sflag [#allocation6], 1
    %18 = vsyncpa %s17, 0
    %19 = vsyncpa [#allocation14], 0
    %s20 = scalar_lea.sflag [#allocation14], 1
    %21 = vsyncpa %s20, 0
    loop: start=0, step=1, limit=5
    $region2: #{tpu_custom_call.1} parent=1 // loop_pre_header
      _
    $region3: #{tpu_custom_call.1} parent=1 // loop_header
      %s23 = sphi 0, %s27
      %p24 = scmp.ge.s32.totalorder %s23, 5
      %s30 = sphi 0, %s42
      %s31 = sphi 0, %s38
      %s32 = sphi 0, %s30
      %s33 = sphi 0, %s31
      %s34 = sphi 0, %s32
      %s35 = sphi 0, %s33
      %s47 = sphi 0, %s49
      %s50 = sphi 0, %s47
      %s51 = sphi 0, %s50
      %s67 = sphi 0, %s51
      %s71 = sphi 0, %s71
      %s73 = sphi 0, %s71
      %s74 = sphi 0, %s73
      %s88 = sphi 0, %s74
      %s94 = sphi 0, %s96
      %s97 = sphi 0, %s94
      %s98 = sphi 0, %s97
      %s114 = sphi 0, %s98
      %s120 = sphi 0, %s122
      %s123 = sphi 0, %s120
      %s124 = sphi 0, %s123
      %s140 = sphi 0, %s124
      %s148 = sphi 0, %s150
      %s151 = sphi 0, %s148
      %s152 = sphi 0, %s151
      %s168 = sphi 0, %s152
      %s176 = sphi 0, %s178
      %s179 = sphi 0, %s176
      %s180 = sphi 0, %s179
      %s196 = sphi 0, %s180
    $region4: #{tpu_custom_call.1} parent=1 // loop_header_branch
      %26 = sbr.rel (%p24) target = $region8
    $region5: #{tpu_custom_call.1} parent=1 // loop_body
      %s28 = ssub.s32 %s23, 1
      %s29 = ssub.s32 %s23, 2
      %s36 = sadd.s32 1, %s31
      %p37 = scmp.ge.s32.totalorder %s36, 3
      %s38 = scalar_select %p37, 0, %s36
      %s39 = sadd.s32 1, %s30
      %s40 = scalar_select %p37, %s39, %s30
      %p41 = scmp.ge.s32.totalorder %s40, 1
      %s42 = scalar_select %p41, 0, %s40
      %s43 = ssub.s32 %s31, %s38
      %s44 = ssub.s32 %s30, %s42
      %s45 = sor.u32 %s43, %s44
      %p46 = scmp.eq.s32.totalorder %s45, 0
      %s48 = sadd.s32 %s47, 1
      %s49 = scalar_select %p46, %s47, %s48
      %p52 = pneg %p46
      %p53 = scmp.eq.s32.totalorder %s23, 2
      %p54 = por %p52, %p53
      %p55 = scmp.ne.s32.totalorder %s47, %s50
      %p56 = scmp.eq.s32.totalorder %s23, 0
      %p57 = por %p55, %p56
      %p58 = scmp.ne.s32.totalorder %s47, %s50
      %p59 = scmp.eq.s32.totalorder %s28, 2
      %p60 = por %p58, %p59
      %p61 = scmp.ne.s32.totalorder %s50, %s51
      %p62 = scmp.eq.s32.totalorder %s28, 0
      %p63 = por %p61, %p62
      %p64 = scmp.ne.s32.totalorder %s50, %s51
      %p65 = scmp.eq.s32.totalorder %s29, 2
      %p66 = por %p64, %p65
      %p68 = scmp.ne.s32.totalorder %s51, %s67
      %p69 = scmp.eq.s32.totalorder %s29, 0
      %p70 = por %p68, %p69
      %s72 = sadd.s32 %s71, 1
      %p75 = scmp.eq.s32.totalorder %s23, 2
      %p76 = scmp.ne.s32.totalorder %s71, %s73
      %p77 = scmp.eq.s32.totalorder %s23, 0
      %p78 = por %p76, %p77
      %p79 = scmp.ne.s32.totalorder %s71, %s73
      %p80 = scmp.eq.s32.totalorder %s28, 2
      %p81 = por %p79, %p80
      %p82 = scmp.ne.s32.totalorder %s73, %s74
      %p83 = scmp.eq.s32.totalorder %s28, 0
      %p84 = por %p82, %p83
      %p85 = scmp.ne.s32.totalorder %s73, %s74
      %p86 = scmp.eq.s32.totalorder %s29, 2
      %p87 = por %p85, %p86
      %p89 = scmp.ne.s32.totalorder %s74, %s88
      %p90 = scmp.eq.s32.totalorder %s29, 0
      %p91 = por %p89, %p90
      %s92 = ssub.s32 %s30, %s42
      %p93 = scmp.eq.s32.totalorder %s92, 0
      %s95 = sadd.s32 %s94, 1
      %s96 = scalar_select %p93, %s94, %s95
      %p99 = pneg %p93
      %p100 = scmp.eq.s32.totalorder %s23, 2
      %p101 = por %p99, %p100
      %p102 = scmp.ne.s32.totalorder %s94, %s97
      %p103 = scmp.eq.s32.totalorder %s23, 0
      %p104 = por %p102, %p103
      %p105 = scmp.ne.s32.totalorder %s94, %s97
      %p106 = scmp.eq.s32.totalorder %s28, 2
      %p107 = por %p105, %p106
      %p108 = scmp.ne.s32.totalorder %s97, %s98
      %p109 = scmp.eq.s32.totalorder %s28, 0
      %p110 = por %p108, %p109
      %p111 = scmp.ne.s32.totalorder %s97, %s98
      %p112 = scmp.eq.s32.totalorder %s29, 2
      %p113 = por %p111, %p112
      %p115 = scmp.ne.s32.totalorder %s98, %s114
      %p116 = scmp.eq.s32.totalorder %s29, 0
      %p117 = por %p115, %p116
      %s118 = ssub.s32 %s30, %s42
      %p119 = scmp.eq.s32.totalorder %s118, 0
      %s121 = sadd.s32 %s120, 1
      %s122 = scalar_select %p119, %s120, %s121
      %p125 = pneg %p119
      %p126 = scmp.eq.s32.totalorder %s23, 2
      %p127 = por %p125, %p126
      %p128 = scmp.ne.s32.totalorder %s120, %s123
      %p129 = scmp.eq.s32.totalorder %s23, 0
      %p130 = por %p128, %p129
      %p131 = scmp.ne.s32.totalorder %s120, %s123
      %p132 = scmp.eq.s32.totalorder %s28, 2
      %p133 = por %p131, %p132
      %p134 = scmp.ne.s32.totalorder %s123, %s124
      %p135 = scmp.eq.s32.totalorder %s28, 0
      %p136 = por %p134, %p135
      %p137 = scmp.ne.s32.totalorder %s123, %s124
      %p138 = scmp.eq.s32.totalorder %s29, 2
      %p139 = por %p137, %p138
      %p141 = scmp.ne.s32.totalorder %s124, %s140
      %p142 = scmp.eq.s32.totalorder %s29, 0
      %p143 = por %p141, %p142
      %s144 = ssub.s32 %s31, %s38
      %s145 = ssub.s32 %s30, %s42
      %s146 = sor.u32 %s144, %s145
      %p147 = scmp.eq.s32.totalorder %s146, 0
      %s149 = sadd.s32 %s148, 1
      %s150 = scalar_select %p147, %s148, %s149
      %p153 = pneg %p147
      %p154 = scmp.eq.s32.totalorder %s23, 2
      %p155 = por %p153, %p154
      %p156 = scmp.ne.s32.totalorder %s148, %s151
      %p157 = scmp.eq.s32.totalorder %s23, 0
      %p158 = por %p156, %p157
      %p159 = scmp.ne.s32.totalorder %s148, %s151
      %p160 = scmp.eq.s32.totalorder %s28, 2
      %p161 = por %p159, %p160
      %p162 = scmp.ne.s32.totalorder %s151, %s152
      %p163 = scmp.eq.s32.totalorder %s28, 0
      %p164 = por %p162, %p163
      %p165 = scmp.ne.s32.totalorder %s151, %s152
      %p166 = scmp.eq.s32.totalorder %s29, 2
      %p167 = por %p165, %p166
      %p169 = scmp.ne.s32.totalorder %s152, %s168
      %p170 = scmp.eq.s32.totalorder %s29, 0
      %p171 = por %p169, %p170
      %s172 = ssub.s32 %s31, %s38
      %s173 = ssub.s32 %s30, %s42
      %s174 = sor.u32 %s172, %s173
      %p175 = scmp.eq.s32.totalorder %s174, 0
      %s177 = sadd.s32 %s176, 1
      %s178 = scalar_select %p175, %s176, %s177
      %p181 = pneg %p175
      %p182 = scmp.eq.s32.totalorder %s23, 2
      %p183 = por %p181, %p182
      %p184 = scmp.ne.s32.totalorder %s176, %s179
      %p185 = scmp.eq.s32.totalorder %s23, 0
      %p186 = por %p184, %p185
      %p187 = scmp.ne.s32.totalorder %s176, %s179
      %p188 = scmp.eq.s32.totalorder %s28, 2
      %p189 = por %p187, %p188
      %p190 = scmp.ne.s32.totalorder %s179, %s180
      %p191 = scmp.eq.s32.totalorder %s28, 0
      %p192 = por %p190, %p191
      %p193 = scmp.ne.s32.totalorder %s179, %s180
      %p194 = scmp.eq.s32.totalorder %s29, 2
      %p195 = por %p193, %p194
      %p197 = scmp.ne.s32.totalorder %s180, %s196
      %p198 = scmp.eq.s32.totalorder %s29, 0
      %p199 = por %p197, %p198
      %p200 = scmp.le.s32.totalorder 1, %s23
      %p201 = scmp.lt.s32.totalorder %s23, 4
      %p202 = pnand %p200, %p201
      %p203 = pneg %p202
      // Predicated region
      $region9: #{tpu_custom_call.1} parent=5 // pred_check
        _
      $region10: #{tpu_custom_call.1} parent=5 // pred_check_branch
        %205 = sbr.rel (%p202) target = $region12
      $region11: #{tpu_custom_call.1} parent=5 // pred_region
        %s206 = ssub.s32 %s23, 1
        // Predicated region
        $region13: #{tpu_custom_call.1} parent=11 // pred_check
          %p207 = pneg %p84
        $region14: #{tpu_custom_call.1} parent=11 // pred_check_branch
          %209 = sbr.rel (%p207) target = $region16
        $region15: #{tpu_custom_call.1} parent=11 // pred_region
          %211 = vsyncadd [#allocation8], 0
          %s212 = sshll.u32 %s1, 4
          %s213 = int_to_ptr.hbm [resolvable:$true] %s212
          %s214 = sshll.u32 [#allocation7], 4
          %s215 = int_to_ptr.vmem [resolvable:$true] %s214
          %220 = dma.hbm_to_vmem [thread:$0]  %s213, 2048, %s215, [#allocation8], 128, 128, 8
        $region16: #{tpu_custom_call.1} parent=11 // pred_fallthru
          _
        // Predicated region
        $region17: #{tpu_custom_call.1} parent=11 // pred_check
          %p221 = pneg %p110
        $region18: #{tpu_custom_call.1} parent=11 // pred_check_branch
          %223 = sbr.rel (%p221) target = $region20
        $region19: #{tpu_custom_call.1} parent=11 // pred_region
          %225 = vsyncadd [#allocation8], 0
          %s226 = smul.addr %s32, 8
          %s227 = scalar_lea.hbm %s2, %s226
          %s229 = sshll.u32 %s227, 4
          %s230 = int_to_ptr.hbm [resolvable:$true] %s229
          %s231 = sshll.u32 [#allocation9], 4
          %s232 = int_to_ptr.vmem [resolvable:$true] %s231
          %234 = dma.hbm_to_vmem [thread:$0]  %s230, 128, %s232, [#allocation8]
        $region20: #{tpu_custom_call.1} parent=11 // pred_fallthru
          _
        // Predicated region
        $region21: #{tpu_custom_call.1} parent=11 // pred_check
          %p235 = pneg %p136
        $region22: #{tpu_custom_call.1} parent=11 // pred_check_branch
          %237 = sbr.rel (%p235) target = $region24
        $region23: #{tpu_custom_call.1} parent=11 // pred_region
          %239 = vsyncadd [#allocation11], 0
          %s240 = smul.addr %s32, 8
          %s241 = scalar_lea.hbm %s3, %s240
          %s243 = sshll.u32 %s241, 4
          %s244 = int_to_ptr.hbm [resolvable:$true] %s243
          %s245 = sshll.u32 [#allocation10], 4
          %s246 = int_to_ptr.vmem [resolvable:$true] %s245
          %248 = dma.hbm_to_vmem [thread:$0]  %s244, 128, %s246, [#allocation11]
        $region24: #{tpu_custom_call.1} parent=11 // pred_fallthru
          _
      $region12: #{tpu_custom_call.1} parent=5 // pred_fallthru
        _
      %p249 = scmp.lt.s32.totalorder %s23, 3
      // Predicated region
      $region25: #{tpu_custom_call.1} parent=5 // pred_check
        %p250 = pneg %p249
      $region26: #{tpu_custom_call.1} parent=5 // pred_check_branch
        %252 = sbr.rel (%p250) target = $region28
      $region27: #{tpu_custom_call.1} parent=5 // pred_region
        // Predicated region
        $region29: #{tpu_custom_call.1} parent=27 // pred_check
          %p253 = pneg %p57
        $region30: #{tpu_custom_call.1} parent=27 // pred_check_branch
          %255 = sbr.rel (%p253) target = $region32
        $region31: #{tpu_custom_call.1} parent=27 // pred_region
          %s256 = sand.u32 %s47, 1
          %s257 = scalar_lea.sflag [#allocation5], %s256
          %s258 = sand.u32 %s47, 1
          %s259 = smul.addr %s258, 128
          %s260 = scalar_lea.vmem [#allocation4], %s259
          %s261 = smul.u32 4, %s31
          %263 = vsyncadd %s257, 0
          %s264 = smul.addr %s261, 4
          %s265 = sadd.s32 %s30, %s264
          %s266 = smul.addr %s265, 8
          %s267 = scalar_lea.hbm %s0, %s266
          %s268 = sshll.u32 %s267, 4
          %s269 = int_to_ptr.hbm [resolvable:$true] %s268
          %s270 = sshll.u32 %s260, 4
          %s271 = int_to_ptr.vmem [resolvable:$true] %s270
          %276 = dma.hbm_to_vmem [thread:$0]  %s269, 2048, %s271, %s257, 128, 128, 8
        $region32: #{tpu_custom_call.1} parent=27 // pred_fallthru
          _
      $region28: #{tpu_custom_call.1} parent=5 // pred_fallthru
        _
      %p277 = scmp.le.s32.totalorder 1, %s23
      %p278 = scmp.lt.s32.totalorder %s23, 4
      %p279 = pnand %p277, %p278
      %p280 = pneg %p279
      // Predicated region
      $region33: #{tpu_custom_call.1} parent=5 // pred_check
        _
      $region34: #{tpu_custom_call.1} parent=5 // pred_check_branch
        %282 = sbr.rel (%p279) target = $region36
      $region35: #{tpu_custom_call.1} parent=5 // pred_region
        %s283 = ssub.s32 %s23, 1
        %s284 = sand.u32 %s50, 1
        %s285 = scalar_lea.sflag [#allocation5], %s284
        %s286 = sand.u32 %s50, 1
        %s287 = smul.addr %s286, 128
        %s288 = scalar_lea.vmem [#allocation4], %s287
        // Predicated region
        $region37: #{tpu_custom_call.1} parent=35 // pred_check
          %p289 = pneg %p63
        $region38: #{tpu_custom_call.1} parent=35 // pred_check_branch
          %291 = sbr.rel (%p289) target = $region40
        $region39: #{tpu_custom_call.1} parent=35 // pred_region
          %293 = dma.done %s285, 2048
        $region40: #{tpu_custom_call.1} parent=35 // pred_fallthru
          _
        // Predicated region
        $region41: #{tpu_custom_call.1} parent=35 // pred_check
          %p294 = pneg %p84
        $region42: #{tpu_custom_call.1} parent=35 // pred_check_branch
          %296 = sbr.rel (%p294) target = $region44
        $region43: #{tpu_custom_call.1} parent=35 // pred_region
          %298 = dma.done [#allocation8], 2048
        $region44: #{tpu_custom_call.1} parent=35 // pred_fallthru
          _
        // Predicated region
        $region45: #{tpu_custom_call.1} parent=35 // pred_check
          %p299 = pneg %p110
        $region46: #{tpu_custom_call.1} parent=35 // pred_check_branch
          %301 = sbr.rel (%p299) target = $region48
        $region47: #{tpu_custom_call.1} parent=35 // pred_region
          %303 = dma.done [#allocation8], 128
        $region48: #{tpu_custom_call.1} parent=35 // pred_fallthru
          _
        // Predicated region
        $region49: #{tpu_custom_call.1} parent=35 // pred_check
          %p304 = pneg %p136
        $region50: #{tpu_custom_call.1} parent=35 // pred_check_branch
          %306 = sbr.rel (%p304) target = $region52
        $region51: #{tpu_custom_call.1} parent=35 // pred_region
          %308 = dma.done [#allocation11], 128
        $region52: #{tpu_custom_call.1} parent=35 // pred_fallthru
          _
        %s309 = sand.u32 %s50, 1
        %s310 = scalar_lea.sflag [#allocation5], %s309
        %s311 = sand.u32 %s50, 1
        %s312 = smul.addr %s311, 128
        %s313 = scalar_lea.vmem [#allocation4], %s312
        %p314 = pneg %p63
        %p315 = pneg %p60
        %p316 = pneg %p84
        %p317 = pneg %p81
        %p318 = pneg %p110
        %p319 = pneg %p107
        %p320 = pneg %p136
        %p321 = pneg %p133
        %p322 = pneg %p164
        %p323 = pneg %p161
        %s324 = sand.u32 %s151, 1
        %s325 = scalar_lea.sflag [#allocation6], %s324
        %s326 = sand.u32 %s151, 1
        %s327 = smul.addr %s326, 32
        %s328 = scalar_lea.vmem [#allocation12], %s327
        %p329 = pneg %p192
        %p330 = pneg %p189
        %s331 = sand.u32 %s179, 1
        %s332 = scalar_lea.sflag [#allocation14], %s331
        %s333 = sand.u32 %s179, 1
        %s334 = smul.addr %s333, 32
        %s335 = scalar_lea.vmem [#allocation13], %s334
        %s336 = smul.u32 4, %s33
        %s337 = smul.u32 4, %s33
        %s338 = smul.u32 4, %s33
        %p339 = scmp.eq.s32.totalorder %s33, 0
        // Predicated region
        $region53: #{tpu_custom_call.1} parent=35 // pred_check
          %p340 = pneg %p339
        $region54: #{tpu_custom_call.1} parent=35 // pred_check_branch
          %342 = sbr.rel (%p340) target = $region56
        $region55: #{tpu_custom_call.1} parent=35 // pred_region
          %v343 = vld [vmem:[#allocation9] sm:$0xff]
          %vm344 = vcmask 261120
          %345 = vst.msk [vmem:[#allocation2] sm:$0xff] %vm344, %v343
          %v346 = vld [vmem:[#allocation10] sm:$0xff]
          %347 = vst.msk [vmem:[#allocation3] sm:$0xff] %vm344, %v346
        $region56: #{tpu_custom_call.1} parent=35 // pred_fallthru
          _
        %v348 = vld [vmem:[#allocation7] sm:$0xff]
        %v349 = vld [vmem:[#allocation7 + $0x8] sm:$0xff]
        %v350 = vld [vmem:[#allocation7 + $0x10] sm:$0xff]
        %v351 = vld [vmem:[#allocation7 + $0x18] sm:$0xff]
        %s352 = scalar_lea.vmem [#allocation7], 32
        %v353 = vld [vmem:[%s352] sm:$0xff]
        %v354 = vld [vmem:[%s352 + $0x8] sm:$0xff]
        %v355 = vld [vmem:[%s352 + $0x10] sm:$0xff]
        %v356 = vld [vmem:[%s352 + $0x18] sm:$0xff]
        %s357 = scalar_lea.vmem [#allocation7], 64
        %v358 = vld [vmem:[%s357] sm:$0xff]
        %v359 = vld [vmem:[%s357 + $0x8] sm:$0xff]
        %v360 = vld [vmem:[%s357 + $0x10] sm:$0xff]
        %v361 = vld [vmem:[%s357 + $0x18] sm:$0xff]
        %s362 = scalar_lea.vmem [#allocation7], 96
        %v363 = vld [vmem:[%s362] sm:$0xff]
        %v364 = vld [vmem:[%s362 + $0x8] sm:$0xff]
        %v365 = vld [vmem:[%s362 + $0x10] sm:$0xff]
        %v366 = vld [vmem:[%s362 + $0x18] sm:$0xff]
        %v367 = vld [vmem:[#allocation2] sm:$0xff]
        %v368 = vld [vmem:[#allocation3] sm:$0xff]
        %v369 = vld [vmem:[%s288] sm:$0xff]
        %vm370 = vcmask 261120
        %v372 = vsel %vm370, %v367, 0
        %374 = vmatpush.msra.mxu0 0.0
        %375 = vmatpush.msra.mxu0 0.0
        %376 = vmatpush.msra.mxu0 0.0
        %377 = vmatpush.msra.mxu0 0.0
        %378 = vmatpush.msra.mxu0 0.0
        %379 = vmatpush.msra.mxu0 0.0
        %380 = vmatpush.msra.mxu0 0.0
        %381 = vmatpush.msra.mxu0 0.0
        %382 = vmatpush.msra.mxu0 0.0
        %383 = vmatpush.msra.mxu0 0.0
        %384 = vmatpush.msra.mxu0 0.0
        %385 = vmatpush.msra.mxu0 0.0
        %386 = vmatpush.msra.mxu0 %v351
        %387 = vmatpush.msra.mxu0 %v350
        %388 = vmatpush.msra.mxu0 %v349
        %389 = vmatpush.msra.mxu0 %v348
        %390 = vmatmul.f32.gmra.mxu0 %v372
        %v391 = vpop.f32.mrf.mxu0
        %v392 = vadd.f32 0.0, %v391
        %393 = vdwg.mxu0
        %v394 = vadd.f32 %v369, %v392
        %s395 = scalar_lea.vmem %s288, 8 [#allocation4]
        %v396 = vld [vmem:[%s395] sm:$0xff]
        %397 = vmatpush.msra.mxu0 0.0
        %398 = vmatpush.msra.mxu0 0.0
        %399 = vmatpush.msra.mxu0 0.0
        %400 = vmatpush.msra.mxu0 0.0
        %401 = vmatpush.msra.mxu0 0.0
        %402 = vmatpush.msra.mxu0 0.0
        %403 = vmatpush.msra.mxu0 0.0
        %404 = vmatpush.msra.mxu0 0.0
        %405 = vmatpush.msra.mxu0 0.0
        %406 = vmatpush.msra.mxu0 0.0
        %407 = vmatpush.msra.mxu0 0.0
        %408 = vmatpush.msra.mxu0 0.0
        %409 = vmatpush.msra.mxu0 %v356
        %410 = vmatpush.msra.mxu0 %v355
        %411 = vmatpush.msra.mxu0 %v354
        %412 = vmatpush.msra.mxu0 %v353
        %413 = vmatmul.f32.gmra.mxu0 %v372
        %v414 = vpop.f32.mrf.mxu0
        %v415 = vadd.f32 0.0, %v414
        %416 = vdwg.mxu0
        %v417 = vadd.f32 %v396, %v415
        %s418 = scalar_lea.vmem %s288, 16 [#allocation4]
        %v419 = vld [vmem:[%s418] sm:$0xff]
        %420 = vmatpush.msra.mxu0 0.0
        %421 = vmatpush.msra.mxu0 0.0
        %422 = vmatpush.msra.mxu0 0.0
        %423 = vmatpush.msra.mxu0 0.0
        %424 = vmatpush.msra.mxu0 0.0
        %425 = vmatpush.msra.mxu0 0.0
        %426 = vmatpush.msra.mxu0 0.0
        %427 = vmatpush.msra.mxu0 0.0
        %428 = vmatpush.msra.mxu0 0.0
        %429 = vmatpush.msra.mxu0 0.0
        %430 = vmatpush.msra.mxu0 0.0
        %431 = vmatpush.msra.mxu0 0.0
        %432 = vmatpush.msra.mxu0 %v361
        %433 = vmatpush.msra.mxu0 %v360
        %434 = vmatpush.msra.mxu0 %v359
        %435 = vmatpush.msra.mxu0 %v358
        %436 = vmatmul.f32.gmra.mxu0 %v372
        %v437 = vpop.f32.mrf.mxu0
        %v438 = vadd.f32 0.0, %v437
        %439 = vdwg.mxu0
        %v440 = vadd.f32 %v419, %v438
        %v441 = vxor.u32 %v394, 2147483648
        %v442 = vmul.f32 %v441, 1.442695
        %v443 = vpow.pop %v442
        %v444 = vadd.f32 %v443, 1.0
        %v445 = vrcp.pop %v444
        %v446 = vmul.f32 %v444, %v445
        %v447 = vsub.f32 1.0, %v446
        %v448 = vmul.f32 %v445, %v447
        %v449 = vadd.f32 %v445, %v448
        %vm450 = vweird.f32 %v444
        %vm451 = vweird.f32 %v445
        %vm452 = vmor %vm450, %vm451
        %v453 = vsel %vm452, %v445, %v449
        %v454 = vand.u32 2147483647, %v444
        %vm455 = vcmp.eq.f32.partialorder %v454, 8.507059e+37
        %v456 = vand.u32 %v444, 2147483648
        %v457 = vor.u32 1.1754944e-38, %v456
        %v458 = vsel %vm455, %v457, %v453
        %v459 = vmul.f32 1.0, %v458
        %v460 = vxor.u32 %v417, 2147483648
        %v461 = vmul.f32 %v460, 1.442695
        %v462 = vpow.pop %v461
        %v463 = vadd.f32 %v462, 1.0
        %v464 = vrcp.pop %v463
        %v465 = vmul.f32 %v463, %v464
        %v466 = vsub.f32 1.0, %v465
        %v467 = vmul.f32 %v464, %v466
        %v468 = vadd.f32 %v464, %v467
        %vm469 = vweird.f32 %v463
        %vm470 = vweird.f32 %v464
        %vm471 = vmor %vm469, %vm470
        %v472 = vsel %vm471, %v464, %v468
        %v473 = vand.u32 2147483647, %v463
        %vm474 = vcmp.eq.f32.partialorder %v473, 8.507059e+37
        %v475 = vand.u32 %v463, 2147483648
        %v476 = vor.u32 1.1754944e-38, %v475
        %v477 = vsel %vm474, %v476, %v472
        %v478 = vmul.f32 1.0, %v477
        %v479 = vtanh.pop %v440
        %v480 = vsub.f32 %v479, %v368
        %v481 = vmul.f32 %v478, %v480
        %v482 = vadd.f32 %v368, %v481
        %s483 = scalar_lea.vmem %s288, 24 [#allocation4]
        %v484 = vld [vmem:[%s483] sm:$0xff]
        %v486 = vsel %vm370, %v482, 0
        %488 = vmatpush.msra.mxu0 0.0
        %489 = vmatpush.msra.mxu0 0.0
        %490 = vmatpush.msra.mxu0 0.0
        %491 = vmatpush.msra.mxu0 0.0
        %492 = vmatpush.msra.mxu0 0.0
        %493 = vmatpush.msra.mxu0 0.0
        %494 = vmatpush.msra.mxu0 0.0
        %495 = vmatpush.msra.mxu0 0.0
        %496 = vmatpush.msra.mxu0 0.0
        %497 = vmatpush.msra.mxu0 0.0
        %498 = vmatpush.msra.mxu0 0.0
        %499 = vmatpush.msra.mxu0 0.0
        %500 = vmatpush.msra.mxu0 %v366
        %501 = vmatpush.msra.mxu0 %v365
        %502 = vmatpush.msra.mxu0 %v364
        %503 = vmatpush.msra.mxu0 %v363
        %504 = vmatmul.f32.gmra.mxu0 %v486
        %v505 = vpop.f32.mrf.mxu0
        %v506 = vadd.f32 0.0, %v505
        %507 = vdwg.mxu0
        %v508 = vadd.f32 %v484, %v506
        %v509 = vtanh.pop %v508
        %v510 = vsub.f32 %v509, %v367
        %v511 = vmul.f32 %v459, %v510
        %v512 = vadd.f32 %v367, %v511
        %513 = vst.msk [vmem:[%s328] sm:$0xff] %vm370, %v512
        %514 = vst.msk [vmem:[%s335] sm:$0xff] %vm370, %v482
        %s515 = scalar_lea.vmem %s288, 32 [#allocation4]
        %v516 = vld [vmem:[%s515] sm:$0xff]
        %v518 = vsel %vm370, %v512, 0
        %520 = vmatpush.msra.mxu0 0.0
        %521 = vmatpush.msra.mxu0 0.0
        %522 = vmatpush.msra.mxu0 0.0
        %523 = vmatpush.msra.mxu0 0.0
        %524 = vmatpush.msra.mxu0 0.0
        %525 = vmatpush.msra.mxu0 0.0
        %526 = vmatpush.msra.mxu0 0.0
        %527 = vmatpush.msra.mxu0 0.0
        %528 = vmatpush.msra.mxu0 0.0
        %529 = vmatpush.msra.mxu0 0.0
        %530 = vmatpush.msra.mxu0 0.0
        %531 = vmatpush.msra.mxu0 0.0
        %532 = vmatpush.msra.mxu0 %v351
        %533 = vmatpush.msra.mxu0 %v350
        %534 = vmatpush.msra.mxu0 %v349
        %535 = vmatpush.msra.mxu0 %v348
        %536 = vmatmul.f32.gmra.mxu0 %v518
        %v537 = vpop.f32.mrf.mxu0
        %v538 = vadd.f32 0.0, %v537
        %539 = vdwg.mxu0
        %v540 = vadd.f32 %v516, %v538
        %s541 = scalar_lea.vmem %s288, 40 [#allocation4]
        %v542 = vld [vmem:[%s541] sm:$0xff]
        %543 = vmatpush.msra.mxu0 0.0
        %544 = vmatpush.msra.mxu0 0.0
        %545 = vmatpush.msra.mxu0 0.0
        %546 = vmatpush.msra.mxu0 0.0
        %547 = vmatpush.msra.mxu0 0.0
        %548 = vmatpush.msra.mxu0 0.0
        %549 = vmatpush.msra.mxu0 0.0
        %550 = vmatpush.msra.mxu0 0.0
        %551 = vmatpush.msra.mxu0 0.0
        %552 = vmatpush.msra.mxu0 0.0
        %553 = vmatpush.msra.mxu0 0.0
        %554 = vmatpush.msra.mxu0 0.0
        %555 = vmatpush.msra.mxu0 %v356
        %556 = vmatpush.msra.mxu0 %v355
        %557 = vmatpush.msra.mxu0 %v354
        %558 = vmatpush.msra.mxu0 %v353
        %559 = vmatmul.f32.gmra.mxu0 %v518
        %v560 = vpop.f32.mrf.mxu0
        %v561 = vadd.f32 0.0, %v560
        %562 = vdwg.mxu0
        %v563 = vadd.f32 %v542, %v561
        %s564 = scalar_lea.vmem %s288, 48 [#allocation4]
        %v565 = vld [vmem:[%s564] sm:$0xff]
        %566 = vmatpush.msra.mxu0 0.0
        %567 = vmatpush.msra.mxu0 0.0
        %568 = vmatpush.msra.mxu0 0.0
        %569 = vmatpush.msra.mxu0 0.0
        %570 = vmatpush.msra.mxu0 0.0
        %571 = vmatpush.msra.mxu0 0.0
        %572 = vmatpush.msra.mxu0 0.0
        %573 = vmatpush.msra.mxu0 0.0
        %574 = vmatpush.msra.mxu0 0.0
        %575 = vmatpush.msra.mxu0 0.0
        %576 = vmatpush.msra.mxu0 0.0
        %577 = vmatpush.msra.mxu0 0.0
        %578 = vmatpush.msra.mxu0 %v361
        %579 = vmatpush.msra.mxu0 %v360
        %580 = vmatpush.msra.mxu0 %v359
        %581 = vmatpush.msra.mxu0 %v358
        %582 = vmatmul.f32.gmra.mxu0 %v518
        %v583 = vpop.f32.mrf.mxu0
        %v584 = vadd.f32 0.0, %v583
        %585 = vdwg.mxu0
        %v586 = vadd.f32 %v565, %v584
        %v587 = vxor.u32 %v540, 2147483648
        %v588 = vmul.f32 %v587, 1.442695
        %v589 = vpow.pop %v588
        %v590 = vadd.f32 %v589, 1.0
        %v591 = vrcp.pop %v590
        %v592 = vmul.f32 %v590, %v591
        %v593 = vsub.f32 1.0, %v592
        %v594 = vmul.f32 %v591, %v593
        %v595 = vadd.f32 %v591, %v594
        %vm596 = vweird.f32 %v590
        %vm597 = vweird.f32 %v591
        %vm598 = vmor %vm596, %vm597
        %v599 = vsel %vm598, %v591, %v595
        %v600 = vand.u32 2147483647, %v590
        %vm601 = vcmp.eq.f32.partialorder %v600, 8.507059e+37
        %v602 = vand.u32 %v590, 2147483648
        %v603 = vor.u32 1.1754944e-38, %v602
        %v604 = vsel %vm601, %v603, %v599
        %v605 = vmul.f32 1.0, %v604
        %v606 = vxor.u32 %v563, 2147483648
        %v607 = vmul.f32 %v606, 1.442695
        %v608 = vpow.pop %v607
        %v609 = vadd.f32 %v608, 1.0
        %v610 = vrcp.pop %v609
        %v611 = vmul.f32 %v609, %v610
        %v612 = vsub.f32 1.0, %v611
        %v613 = vmul.f32 %v610, %v612
        %v614 = vadd.f32 %v610, %v613
        %vm615 = vweird.f32 %v609
        %vm616 = vweird.f32 %v610
        %vm617 = vmor %vm615, %vm616
        %v618 = vsel %vm617, %v610, %v614
        %v619 = vand.u32 2147483647, %v609
        %vm620 = vcmp.eq.f32.partialorder %v619, 8.507059e+37
        %v621 = vand.u32 %v609, 2147483648
        %v622 = vor.u32 1.1754944e-38, %v621
        %v623 = vsel %vm620, %v622, %v618
        %v624 = vmul.f32 1.0, %v623
        %v625 = vtanh.pop %v586
        %v626 = vsub.f32 %v625, %v482
        %v627 = vmul.f32 %v624, %v626
        %v628 = vadd.f32 %v482, %v627
        %s629 = scalar_lea.vmem %s288, 56 [#allocation4]
        %v630 = vld [vmem:[%s629] sm:$0xff]
        %v632 = vsel %vm370, %v628, 0
        %634 = vmatpush.msra.mxu0 0.0
        %635 = vmatpush.msra.mxu0 0.0
        %636 = vmatpush.msra.mxu0 0.0
        %637 = vmatpush.msra.mxu0 0.0
        %638 = vmatpush.msra.mxu0 0.0
        %639 = vmatpush.msra.mxu0 0.0
        %640 = vmatpush.msra.mxu0 0.0
        %641 = vmatpush.msra.mxu0 0.0
        %642 = vmatpush.msra.mxu0 0.0
        %643 = vmatpush.msra.mxu0 0.0
        %644 = vmatpush.msra.mxu0 0.0
        %645 = vmatpush.msra.mxu0 0.0
        %646 = vmatpush.msra.mxu0 %v366
        %647 = vmatpush.msra.mxu0 %v365
        %648 = vmatpush.msra.mxu0 %v364
        %649 = vmatpush.msra.mxu0 %v363
        %650 = vmatmul.f32.gmra.mxu0 %v632
        %v651 = vpop.f32.mrf.mxu0
        %v652 = vadd.f32 0.0, %v651
        %653 = vdwg.mxu0
        %v654 = vadd.f32 %v630, %v652
        %v655 = vtanh.pop %v654
        %v656 = vsub.f32 %v655, %v512
        %v657 = vmul.f32 %v605, %v656
        %v658 = vadd.f32 %v512, %v657
        %s659 = scalar_lea.vmem %s328, 8 [#allocation12]
        %660 = vst.msk [vmem:[%s659] sm:$0xff] %vm370, %v658
        %s661 = scalar_lea.vmem %s335, 8 [#allocation13]
        %662 = vst.msk [vmem:[%s661] sm:$0xff] %vm370, %v628
        %s663 = scalar_lea.vmem %s288, 64 [#allocation4]
        %v664 = vld [vmem:[%s663] sm:$0xff]
        %v666 = vsel %vm370, %v658, 0
        %668 = vmatpush.msra.mxu0 0.0
        %669 = vmatpush.msra.mxu0 0.0
        %670 = vmatpush.msra.mxu0 0.0
        %671 = vmatpush.msra.mxu0 0.0
        %672 = vmatpush.msra.mxu0 0.0
        %673 = vmatpush.msra.mxu0 0.0
        %674 = vmatpush.msra.mxu0 0.0
        %675 = vmatpush.msra.mxu0 0.0
        %676 = vmatpush.msra.mxu0 0.0
        %677 = vmatpush.msra.mxu0 0.0
        %678 = vmatpush.msra.mxu0 0.0
        %679 = vmatpush.msra.mxu0 0.0
        %680 = vmatpush.msra.mxu0 %v351
        %681 = vmatpush.msra.mxu0 %v350
        %682 = vmatpush.msra.mxu0 %v349
        %683 = vmatpush.msra.mxu0 %v348
        %684 = vmatmul.f32.gmra.mxu0 %v666
        %v685 = vpop.f32.mrf.mxu0
        %v686 = vadd.f32 0.0, %v685
        %687 = vdwg.mxu0
        %v688 = vadd.f32 %v664, %v686
        %s689 = scalar_lea.vmem %s288, 72 [#allocation4]
        %v690 = vld [vmem:[%s689] sm:$0xff]
        %691 = vmatpush.msra.mxu0 0.0
        %692 = vmatpush.msra.mxu0 0.0
        %693 = vmatpush.msra.mxu0 0.0
        %694 = vmatpush.msra.mxu0 0.0
        %695 = vmatpush.msra.mxu0 0.0
        %696 = vmatpush.msra.mxu0 0.0
        %697 = vmatpush.msra.mxu0 0.0
        %698 = vmatpush.msra.mxu0 0.0
        %699 = vmatpush.msra.mxu0 0.0
        %700 = vmatpush.msra.mxu0 0.0
        %701 = vmatpush.msra.mxu0 0.0
        %702 = vmatpush.msra.mxu0 0.0
        %703 = vmatpush.msra.mxu0 %v356
        %704 = vmatpush.msra.mxu0 %v355
        %705 = vmatpush.msra.mxu0 %v354
        %706 = vmatpush.msra.mxu0 %v353
        %707 = vmatmul.f32.gmra.mxu0 %v666
        %v708 = vpop.f32.mrf.mxu0
        %v709 = vadd.f32 0.0, %v708
        %710 = vdwg.mxu0
        %v711 = vadd.f32 %v690, %v709
        %s712 = scalar_lea.vmem %s288, 80 [#allocation4]
        %v713 = vld [vmem:[%s712] sm:$0xff]
        %714 = vmatpush.msra.mxu0 0.0
        %715 = vmatpush.msra.mxu0 0.0
        %716 = vmatpush.msra.mxu0 0.0
        %717 = vmatpush.msra.mxu0 0.0
        %718 = vmatpush.msra.mxu0 0.0
        %719 = vmatpush.msra.mxu0 0.0
        %720 = vmatpush.msra.mxu0 0.0
        %721 = vmatpush.msra.mxu0 0.0
        %722 = vmatpush.msra.mxu0 0.0
        %723 = vmatpush.msra.mxu0 0.0
        %724 = vmatpush.msra.mxu0 0.0
        %725 = vmatpush.msra.mxu0 0.0
        %726 = vmatpush.msra.mxu0 %v361
        %727 = vmatpush.msra.mxu0 %v360
        %728 = vmatpush.msra.mxu0 %v359
        %729 = vmatpush.msra.mxu0 %v358
        %730 = vmatmul.f32.gmra.mxu0 %v666
        %v731 = vpop.f32.mrf.mxu0
        %v732 = vadd.f32 0.0, %v731
        %733 = vdwg.mxu0
        %v734 = vadd.f32 %v713, %v732
        %v735 = vxor.u32 %v688, 2147483648
        %v736 = vmul.f32 %v735, 1.442695
        %v737 = vpow.pop %v736
        %v738 = vadd.f32 %v737, 1.0
        %v739 = vrcp.pop %v738
        %v740 = vmul.f32 %v738, %v739
        %v741 = vsub.f32 1.0, %v740
        %v742 = vmul.f32 %v739, %v741
        %v743 = vadd.f32 %v739, %v742
        %vm744 = vweird.f32 %v738
        %vm745 = vweird.f32 %v739
        %vm746 = vmor %vm744, %vm745
        %v747 = vsel %vm746, %v739, %v743
        %v748 = vand.u32 2147483647, %v738
        %vm749 = vcmp.eq.f32.partialorder %v748, 8.507059e+37
        %v750 = vand.u32 %v738, 2147483648
        %v751 = vor.u32 1.1754944e-38, %v750
        %v752 = vsel %vm749, %v751, %v747
        %v753 = vmul.f32 1.0, %v752
        %v754 = vxor.u32 %v711, 2147483648
        %v755 = vmul.f32 %v754, 1.442695
        %v756 = vpow.pop %v755
        %v757 = vadd.f32 %v756, 1.0
        %v758 = vrcp.pop %v757
        %v759 = vmul.f32 %v757, %v758
        %v760 = vsub.f32 1.0, %v759
        %v761 = vmul.f32 %v758, %v760
        %v762 = vadd.f32 %v758, %v761
        %vm763 = vweird.f32 %v757
        %vm764 = vweird.f32 %v758
        %vm765 = vmor %vm763, %vm764
        %v766 = vsel %vm765, %v758, %v762
        %v767 = vand.u32 2147483647, %v757
        %vm768 = vcmp.eq.f32.partialorder %v767, 8.507059e+37
        %v769 = vand.u32 %v757, 2147483648
        %v770 = vor.u32 1.1754944e-38, %v769
        %v771 = vsel %vm768, %v770, %v766
        %v772 = vmul.f32 1.0, %v771
        %v773 = vtanh.pop %v734
        %v774 = vsub.f32 %v773, %v628
        %v775 = vmul.f32 %v772, %v774
        %v776 = vadd.f32 %v628, %v775
        %s777 = scalar_lea.vmem %s288, 88 [#allocation4]
        %v778 = vld [vmem:[%s777] sm:$0xff]
        %v780 = vsel %vm370, %v776, 0
        %782 = vmatpush.msra.mxu0 0.0
        %783 = vmatpush.msra.mxu0 0.0
        %784 = vmatpush.msra.mxu0 0.0
        %785 = vmatpush.msra.mxu0 0.0
        %786 = vmatpush.msra.mxu0 0.0
        %787 = vmatpush.msra.mxu0 0.0
        %788 = vmatpush.msra.mxu0 0.0
        %789 = vmatpush.msra.mxu0 0.0
        %790 = vmatpush.msra.mxu0 0.0
        %791 = vmatpush.msra.mxu0 0.0
        %792 = vmatpush.msra.mxu0 0.0
        %793 = vmatpush.msra.mxu0 0.0
        %794 = vmatpush.msra.mxu0 %v366
        %795 = vmatpush.msra.mxu0 %v365
        %796 = vmatpush.msra.mxu0 %v364
        %797 = vmatpush.msra.mxu0 %v363
        %798 = vmatmul.f32.gmra.mxu0 %v780
        %v799 = vpop.f32.mrf.mxu0
        %v800 = vadd.f32 0.0, %v799
        %801 = vdwg.mxu0
        %v802 = vadd.f32 %v778, %v800
        %v803 = vtanh.pop %v802
        %v804 = vsub.f32 %v803, %v658
        %v805 = vmul.f32 %v753, %v804
        %v806 = vadd.f32 %v658, %v805
        %s807 = scalar_lea.vmem %s328, 16 [#allocation12]
        %808 = vst.msk [vmem:[%s807] sm:$0xff] %vm370, %v806
        %s809 = scalar_lea.vmem %s335, 16 [#allocation13]
        %810 = vst.msk [vmem:[%s809] sm:$0xff] %vm370, %v776
        %s811 = scalar_lea.vmem %s288, 96 [#allocation4]
        %v812 = vld [vmem:[%s811] sm:$0xff]
        %v814 = vsel %vm370, %v806, 0
        %816 = vmatpush.msra.mxu0 0.0
        %817 = vmatpush.msra.mxu0 0.0
        %818 = vmatpush.msra.mxu0 0.0
        %819 = vmatpush.msra.mxu0 0.0
        %820 = vmatpush.msra.mxu0 0.0
        %821 = vmatpush.msra.mxu0 0.0
        %822 = vmatpush.msra.mxu0 0.0
        %823 = vmatpush.msra.mxu0 0.0
        %824 = vmatpush.msra.mxu0 0.0
        %825 = vmatpush.msra.mxu0 0.0
        %826 = vmatpush.msra.mxu0 0.0
        %827 = vmatpush.msra.mxu0 0.0
        %828 = vmatpush.msra.mxu0 %v351
        %829 = vmatpush.msra.mxu0 %v350
        %830 = vmatpush.msra.mxu0 %v349
        %831 = vmatpush.msra.mxu0 %v348
        %832 = vmatmul.f32.gmra.mxu0 %v814
        %v833 = vpop.f32.mrf.mxu0
        %v834 = vadd.f32 0.0, %v833
        %835 = vdwg.mxu0
        %v836 = vadd.f32 %v812, %v834
        %s837 = scalar_lea.vmem %s288, 104 [#allocation4]
        %v838 = vld [vmem:[%s837] sm:$0xff]
        %839 = vmatpush.msra.mxu0 0.0
        %840 = vmatpush.msra.mxu0 0.0
        %841 = vmatpush.msra.mxu0 0.0
        %842 = vmatpush.msra.mxu0 0.0
        %843 = vmatpush.msra.mxu0 0.0
        %844 = vmatpush.msra.mxu0 0.0
        %845 = vmatpush.msra.mxu0 0.0
        %846 = vmatpush.msra.mxu0 0.0
        %847 = vmatpush.msra.mxu0 0.0
        %848 = vmatpush.msra.mxu0 0.0
        %849 = vmatpush.msra.mxu0 0.0
        %850 = vmatpush.msra.mxu0 0.0
        %851 = vmatpush.msra.mxu0 %v356
        %852 = vmatpush.msra.mxu0 %v355
        %853 = vmatpush.msra.mxu0 %v354
        %854 = vmatpush.msra.mxu0 %v353
        %855 = vmatmul.f32.gmra.mxu0 %v814
        %v856 = vpop.f32.mrf.mxu0
        %v857 = vadd.f32 0.0, %v856
        %858 = vdwg.mxu0
        %v859 = vadd.f32 %v838, %v857
        %s860 = scalar_lea.vmem %s288, 112 [#allocation4]
        %v861 = vld [vmem:[%s860] sm:$0xff]
        %862 = vmatpush.msra.mxu0 0.0
        %863 = vmatpush.msra.mxu0 0.0
        %864 = vmatpush.msra.mxu0 0.0
        %865 = vmatpush.msra.mxu0 0.0
        %866 = vmatpush.msra.mxu0 0.0
        %867 = vmatpush.msra.mxu0 0.0
        %868 = vmatpush.msra.mxu0 0.0
        %869 = vmatpush.msra.mxu0 0.0
        %870 = vmatpush.msra.mxu0 0.0
        %871 = vmatpush.msra.mxu0 0.0
        %872 = vmatpush.msra.mxu0 0.0
        %873 = vmatpush.msra.mxu0 0.0
        %874 = vmatpush.msra.mxu0 %v361
        %875 = vmatpush.msra.mxu0 %v360
        %876 = vmatpush.msra.mxu0 %v359
        %877 = vmatpush.msra.mxu0 %v358
        %878 = vmatmul.f32.gmra.mxu0 %v814
        %v879 = vpop.f32.mrf.mxu0
        %v880 = vadd.f32 0.0, %v879
        %881 = vdwg.mxu0
        %v882 = vadd.f32 %v861, %v880
        %v883 = vxor.u32 %v836, 2147483648
        %v884 = vmul.f32 %v883, 1.442695
        %v885 = vpow.pop %v884
        %v886 = vadd.f32 %v885, 1.0
        %v887 = vrcp.pop %v886
        %v888 = vmul.f32 %v886, %v887
        %v889 = vsub.f32 1.0, %v888
        %v890 = vmul.f32 %v887, %v889
        %v891 = vadd.f32 %v887, %v890
        %vm892 = vweird.f32 %v886
        %vm893 = vweird.f32 %v887
        %vm894 = vmor %vm892, %vm893
        %v895 = vsel %vm894, %v887, %v891
        %v896 = vand.u32 2147483647, %v886
        %vm897 = vcmp.eq.f32.partialorder %v896, 8.507059e+37
        %v898 = vand.u32 %v886, 2147483648
        %v899 = vor.u32 1.1754944e-38, %v898
        %v900 = vsel %vm897, %v899, %v895
        %v901 = vmul.f32 1.0, %v900
        %v902 = vxor.u32 %v859, 2147483648
        %v903 = vmul.f32 %v902, 1.442695
        %v904 = vpow.pop %v903
        %v905 = vadd.f32 %v904, 1.0
        %v906 = vrcp.pop %v905
        %v907 = vmul.f32 %v905, %v906
        %v908 = vsub.f32 1.0, %v907
        %v909 = vmul.f32 %v906, %v908
        %v910 = vadd.f32 %v906, %v909
        %vm911 = vweird.f32 %v905
        %vm912 = vweird.f32 %v906
        %vm913 = vmor %vm911, %vm912
        %v914 = vsel %vm913, %v906, %v910
        %v915 = vand.u32 2147483647, %v905
        %vm916 = vcmp.eq.f32.partialorder %v915, 8.507059e+37
        %v917 = vand.u32 %v905, 2147483648
        %v918 = vor.u32 1.1754944e-38, %v917
        %v919 = vsel %vm916, %v918, %v914
        %v920 = vmul.f32 1.0, %v919
        %v921 = vtanh.pop %v882
        %v922 = vsub.f32 %v921, %v776
        %v923 = vmul.f32 %v920, %v922
        %v924 = vadd.f32 %v776, %v923
        %s925 = scalar_lea.vmem %s288, 120 [#allocation4]
        %v926 = vld [vmem:[%s925] sm:$0xff]
        %v928 = vsel %vm370, %v924, 0
        %930 = vmatpush.msra.mxu0 0.0
        %931 = vmatpush.msra.mxu0 0.0
        %932 = vmatpush.msra.mxu0 0.0
        %933 = vmatpush.msra.mxu0 0.0
        %934 = vmatpush.msra.mxu0 0.0
        %935 = vmatpush.msra.mxu0 0.0
        %936 = vmatpush.msra.mxu0 0.0
        %937 = vmatpush.msra.mxu0 0.0
        %938 = vmatpush.msra.mxu0 0.0
        %939 = vmatpush.msra.mxu0 0.0
        %940 = vmatpush.msra.mxu0 0.0
        %941 = vmatpush.msra.mxu0 0.0
        %942 = vmatpush.msra.mxu0 %v366
        %943 = vmatpush.msra.mxu0 %v365
        %944 = vmatpush.msra.mxu0 %v364
        %945 = vmatpush.msra.mxu0 %v363
        %946 = vmatmul.f32.gmra.mxu0 %v928
        %v947 = vpop.f32.mrf.mxu0
        %v948 = vadd.f32 0.0, %v947
        %949 = vdwg.mxu0
        %v950 = vadd.f32 %v926, %v948
        %v951 = vtanh.pop %v950
        %v952 = vsub.f32 %v951, %v806
        %v953 = vmul.f32 %v901, %v952
        %v954 = vadd.f32 %v806, %v953
        %s955 = scalar_lea.vmem %s328, 24 [#allocation12]
        %956 = vst.msk [vmem:[%s955] sm:$0xff] %vm370, %v954
        %s957 = scalar_lea.vmem %s335, 24 [#allocation13]
        %958 = vst.msk [vmem:[%s957] sm:$0xff] %vm370, %v924
        %959 = vst.msk [vmem:[#allocation2] sm:$0xff] %vm370, %v954
        %960 = vst.msk [vmem:[#allocation3] sm:$0xff] %vm370, %v924
        %s961 = sand.u32 %s151, 1
        %s962 = scalar_lea.sflag [#allocation6], %s961
        %s963 = sand.u32 %s151, 1
        %s964 = smul.addr %s963, 32
        %s965 = scalar_lea.vmem [#allocation12], %s964
        %s966 = sand.u32 %s179, 1
        %s967 = scalar_lea.sflag [#allocation14], %s966
        %s968 = sand.u32 %s179, 1
        %s969 = smul.addr %s968, 32
        %s970 = scalar_lea.vmem [#allocation13], %s969
        // Predicated region
        $region57: #{tpu_custom_call.1} parent=35 // pred_check
          %p971 = pneg %p161
        $region58: #{tpu_custom_call.1} parent=35 // pred_check_branch
          %973 = sbr.rel (%p971) target = $region60
        $region59: #{tpu_custom_call.1} parent=35 // pred_region
          %s974 = smul.u32 4, %s33
          %976 = vsyncadd %s962, 0
          %s977 = sadd.s32 %s32, %s974
          %s978 = smul.addr %s977, 8
          %s979 = scalar_lea.hbm %s4, %s978
          %s980 = sshll.u32 %s965, 4
          %s981 = int_to_ptr.vmem [resolvable:$true] %s980
          %s982 = sshll.u32 %s979, 4
          %s983 = int_to_ptr.hbm [resolvable:$true] %s982
          %988 = dma.vmem_to_hbm [thread:$0]  %s981, 512, %s983, %s962, 128, 128, 8
        $region60: #{tpu_custom_call.1} parent=35 // pred_fallthru
          _
        // Predicated region
        $region61: #{tpu_custom_call.1} parent=35 // pred_check
          %p989 = pneg %p189
        $region62: #{tpu_custom_call.1} parent=35 // pred_check_branch
          %991 = sbr.rel (%p989) target = $region64
        $region63: #{tpu_custom_call.1} parent=35 // pred_region
          %s992 = smul.u32 4, %s33
          %994 = vsyncadd %s967, 0
          %s995 = sadd.s32 %s32, %s992
          %s996 = smul.addr %s995, 8
          %s997 = scalar_lea.hbm %s5, %s996
          %s998 = sshll.u32 %s970, 4
          %s999 = int_to_ptr.vmem [resolvable:$true] %s998
          %s1000 = sshll.u32 %s997, 4
          %s1001 = int_to_ptr.hbm [resolvable:$true] %s1000
          %1006 = dma.vmem_to_hbm [thread:$0]  %s999, 512, %s1001, %s967, 128, 128, 8
        $region64: #{tpu_custom_call.1} parent=35 // pred_fallthru
          _
      $region36: #{tpu_custom_call.1} parent=5 // pred_fallthru
        _
      %p1007 = scmp.le.s32.totalorder 2, %s23
      // Predicated region
      $region65: #{tpu_custom_call.1} parent=5 // pred_check
        %p1008 = pneg %p1007
      $region66: #{tpu_custom_call.1} parent=5 // pred_check_branch
        %1010 = sbr.rel (%p1008) target = $region68
      $region67: #{tpu_custom_call.1} parent=5 // pred_region
        %s1011 = ssub.s32 %s23, 2
        // Predicated region
        $region69: #{tpu_custom_call.1} parent=67 // pred_check
          %p1012 = pneg %p167
        $region70: #{tpu_custom_call.1} parent=67 // pred_check_branch
          %1014 = sbr.rel (%p1012) target = $region72
        $region71: #{tpu_custom_call.1} parent=67 // pred_region
          %s1015 = sand.u32 %s152, 1
          %s1016 = scalar_lea.sflag [#allocation6], %s1015
          %s1017 = sand.u32 %s152, 1
          %s1018 = smul.addr %s1017, 32
          %s1019 = scalar_lea.vmem [#allocation12], %s1018
          %1021 = dma.done %s1016, 512
        $region72: #{tpu_custom_call.1} parent=67 // pred_fallthru
          _
        // Predicated region
        $region73: #{tpu_custom_call.1} parent=67 // pred_check
          %p1022 = pneg %p195
        $region74: #{tpu_custom_call.1} parent=67 // pred_check_branch
          %1024 = sbr.rel (%p1022) target = $region76
        $region75: #{tpu_custom_call.1} parent=67 // pred_region
          %s1025 = sand.u32 %s180, 1
          %s1026 = scalar_lea.sflag [#allocation14], %s1025
          %s1027 = sand.u32 %s180, 1
          %s1028 = smul.addr %s1027, 32
          %s1029 = scalar_lea.vmem [#allocation13], %s1028
          %1031 = dma.done %s1026, 512
        $region76: #{tpu_custom_call.1} parent=67 // pred_fallthru
          _
      $region68: #{tpu_custom_call.1} parent=5 // pred_fallthru
        _
    $region6: #{tpu_custom_call.1} parent=1 // loop_footer
      %s27 = sadd.s32 1, %s23
    $region7: #{tpu_custom_call.1} parent=1 // loop_footer_branch
      %22 = sbr.rel target = $region3
    $region8: #{tpu_custom_call.1} parent=1 // loop_exit
      _
    %1032 = vsyncpa [#allocation5], 1
    %s1033 = scalar_lea.sflag [#allocation5], 1
    %1034 = vsyncpa %s1033, 1
    %1035 = vsyncpa [#allocation8], 1
    %1036 = vsyncpa [#allocation11], 1
    %1037 = vsyncpa [#allocation6], 1
    %s1038 = scalar_lea.sflag [#allocation6], 1
    %1039 = vsyncpa %s1038, 1
    %1040 = vsyncpa [#allocation14], 1
    %s1041 = scalar_lea.sflag [#allocation14], 1
    %1042 = vsyncpa %s1041, 1

</llo_original>
